<compile_context>
chip_gen: v7x
topology: tpu7x:2x2x1
jax: 0.10.0
libtpu: 0.0.40
codegen_flags: <defaults>
</compile_context>

<pallas_src>
import functools
import math

import jax
import jax.numpy as jnp
from jax.experimental import pallas as pl
from jax.experimental.pallas import tpu as pltpu

_EPS = 1e-5   # PyTorch BatchNorm2d default eps


def _preact_resnet_block_kernel(
    x_ref,                       # (N*H, W*Cin)                         lane-dense input
    a1_ref, g1_ref, b1_ref,      # (W*Cin, W*Cin), (1, W*Cin), (1, W*Cin)      BN1 helpers
    w1_ref, cb1_ref,             # (3, W*Cin, W*Cout), (1, W*Cout)             conv1 band weights / bias row
    a2_ref, g2_ref, b2_ref,      # (W*Cout, W*Cout), (1, W*Cout), (1, W*Cout)  BN2 helpers
    w2_ref, ob_ref,              # (3, W*Cout, W*Cout), (1, W*Cout)            conv2 band weights (lambd folded) / final bias row
    *rest,                       # [ws_ref (W*Cin, W*Cout)]  out_ref  pad_ref
    n, h, w, cin, cout, has_skip_conv,
):
    if has_skip_conv:
        ws_ref, out_ref, pad_ref = rest
    else:
        out_ref, pad_ref = rest

    rows = n * h
    lin, lout = w * cin, w * cout
    lmax = pad_ref.shape[2]

    # Halo-only clear: rows 0 and h+1 of the vertically padded scratch (full lane width so
    # both convs read zeros there).  Interior rows are fully overwritten before each conv,
    # and horizontal zero-padding is folded into the band weights (no left/right halo).
    zrow = jnp.zeros((n, 1, lmax), jnp.float32)
    pad_ref[:, 0:1, :] = zrow
    pad_ref[:, h + 1:h + 2, :] = zrow

    def bn_relu(t, a_ref, g_row_ref, b_row_ref):
        # Train-mode BatchNorm (per-channel batch stats over N*H*W, biased variance,
        # TWO-PASS for numerical robustness) + ReLU, entirely on the lane-dense (rows, W*C)
        # view.  A = kron(ones(W,W), eye(C)) / count, so  sum_row @ A  is the per-channel
        # mean already broadcast back over every x position.
        a = a_ref[...]
        mean_row = jnp.dot(jnp.sum(t, axis=0, keepdims=True), a,
                           preferred_element_type=jnp.float32)
        d = t - mean_row
        var_row = jnp.dot(jnp.sum(d * d, axis=0, keepdims=True), a,
                          preferred_element_type=jnp.float32)
        scale_row = g_row_ref[...] * jax.lax.rsqrt(var_row + _EPS)
        return jnp.maximum(d * scale_row + b_row_ref[...], 0.0)

    def conv3x3(h2d, lw, w_ref, bias_row):
        # 3x3 conv as 3 accumulating MXU matmuls (one per kernel row dy) against banded
        # weight matrices that already encode the dx taps and the horizontal zero-padding.
        pad_ref[:, 1:h + 1, :lw] = h2d.reshape(n, h, lw)
        acc = None
        for dy in range(3):                                   # static unroll: 3 row shifts
            win = pad_ref[:, dy:dy + h, :lw].reshape(rows, lw)
            part = jnp.dot(win, w_ref[dy], preferred_element_type=jnp.float32)
            acc = part if acc is None else acc + part
        return acc if bias_row is None else acc + bias_row

    x2 = x_ref[...]                                           # (rows, lin)

    # pre-activation branch: BN1 -> ReLU -> Conv3x3 -> BN2 -> ReLU -> Conv3x3
    h1 = bn_relu(x2, a1_ref, g1_ref, b1_ref)
    c1 = conv3x3(h1, lin, w1_ref, cb1_ref[...])
    h2 = bn_relu(c1, a2_ref, g2_ref, b2_ref)
    c2 = conv3x3(h2, lout, w2_ref, None)                      # lambd folded into w2 / ob

    # skip connection: 1x1 conv as one block-diagonal matmul, or identity add
    if has_skip_conv:
        skip = jnp.dot(x2, ws_ref[...], preferred_element_type=jnp.float32)
    else:
        skip = x2

    # lane-dense (rows, W*Cout) output -> unmasked full-lane stores
    out_ref[...] = skip + c2 + ob_ref[...]


def preact_resnet_block(x_nchw, params, lambd=1.0):
    """PreActResnetBlock forward. x_nchw: (N, Cin, H, W) float32. Returns (N, Cout, H, W)."""
    x = jnp.transpose(x_nchw, (0, 2, 3, 1)).astype(jnp.float32)      # NCHW -> NHWC
    N, H, W, Cin = x.shape
    Cout = params["w1"].shape[0]
    Lin, Lout = W * Cin, W * Cout
    Lmax = max(Lin, Lout)
    count = float(N * H * W)

    has_skip_conv = params.get("ws") is not None
    if not has_skip_conv:
        assert Cin == Cout, "identity skip requires input_dim == output_dim"

    x2 = x.reshape(N * H, Lin)                                       # lane-dense input view

    def band_weights(w_oihw, ci, co, scale=1.0):
        # PyTorch (O, I, 3, 3) -> 3 banded matrices (dy-indexed), each (W*ci, W*co):
        #   M_dy[xi*ci + c_in, xo*co + c_out] = w[c_out, c_in, dy, dx]  with xi = xo + dx - 1;
        # out-of-range xi simply has no band entry, which implements the horizontal zero-pad.
        wt = jnp.asarray(w_oihw, jnp.float32) * scale                # (co, ci, 3, 3)
        mats = []
        for dy in range(3):
            m = jnp.zeros((W * ci, W * co), jnp.float32)
            for dx in range(3):
                m = m + jnp.kron(jnp.eye(W, k=1 - dx, dtype=jnp.float32),
                                 wt[:, :, dy, dx].T)
            mats.append(m)
        return jnp.stack(mats)                                       # (3, W*ci, W*co)

    row = lambda v: jnp.asarray(v, jnp.float32).reshape(1, -1)
    tile_row = lambda v: jnp.tile(row(v), (1, W))                    # per-channel -> (1, W*C)
    avg_mat = lambda c: jnp.kron(jnp.ones((W, W), jnp.float32),
                                 jnp.eye(c, dtype=jnp.float32)) / count

    out_bias_row = float(lambd) * tile_row(params["cb2"])
    ws_band = None
    if has_skip_conv:
        ws2d = jnp.asarray(params["ws"], jnp.float32).reshape(Cout, Cin)
        ws_band = jnp.kron(jnp.eye(W, dtype=jnp.float32), ws2d.T)    # (W*Cin, W*Cout)
        out_bias_row = out_bias_row + tile_row(params["sb"])

    args = [x2,
            avg_mat(Cin), tile_row(params["g1"]), tile_row(params["b1"]),
            band_weights(params["w1"], Cin, Cout), tile_row(params["cb1"]),
            avg_mat(Cout), tile_row(params["g2"]), tile_row(params["b2"]),
            band_weights(params["w2"], Cout, Cout, scale=float(lambd)),
            out_bias_row]
    if has_skip_conv:
        args.append(ws_band)

    kernel = functools.partial(_preact_resnet_block_kernel,
                               n=N, h=H, w=W, cin=Cin, cout=Cout,
                               has_skip_conv=has_skip_conv)
    vmem = pl.BlockSpec(memory_space=pltpu.MemorySpace.VMEM)

    # VMEM budget from the actual buffers (+ headroom for lane-dense temporaries), capped by
    # the device capacity (~48 MiB effective on v7x, ~96 MiB on v5e/v6e) and asserted.
    arg_bytes = sum(int(a.size) * 4 for a in args)
    out_bytes = 4 * N * H * Lout
    scratch_bytes = 4 * N * (H + 2) * Lmax
    temp_bytes = 4 * 12 * N * H * Lmax
    need = 2 * (arg_bytes + out_bytes) + scratch_bytes + temp_bytes
    try:
        cap = int(pltpu.get_tpu_info().vmem_capacity_bytes)
    except Exception:
        cap = 64 << 20                       # conservative fallback (v7x per-TC VMEM)
    vmem_limit = int(min(max(need, 16 << 20), (cap * 3) // 4))
    assert need <= vmem_limit, (
        f"working set ~{need} B exceeds VMEM budget {vmem_limit} B; "
        "use an H-band tiled variant for this shape")
    # TODO(synk): for large N*H*W*C, add an H-row-band grid (two-pass BN: global sum/sumsq
    #             pass, then normalize+conv pass with a +/-1 row halo), mark the band axis
    #             "parallel" so v7x's second TensorCore is used, and cast matmul operands to
    #             bf16 when C >= 128 (keeping preferred_element_type=f32).

    out2d = pl.pallas_call(
        kernel,
        out_shape=jax.ShapeDtypeStruct((N * H, Lout), jnp.float32),
        in_specs=[vmem] * len(args),
        out_specs=vmem,
        scratch_shapes=[
            pltpu.VMEM((N, H + 2, Lmax), jnp.float32),   # vertically padded conv-input rows
        ],
        compiler_params=pltpu.CompilerParams(vmem_limit_bytes=vmem_limit),
    )(*args)
    return jnp.transpose(out2d.reshape(N, H, W, Cout), (0, 3, 1, 2))   # -> NCHW


def _reference(x, p, lambd=1.0):
    """Pure-JAX reference of the PyTorch forward (NCHW), for correctness check."""
    def bn(t, g, b):
        m = jnp.mean(t, axis=(0, 2, 3), keepdims=True)
        v = jnp.mean((t - m) ** 2, axis=(0, 2, 3), keepdims=True)
        return (t - m) / jnp.sqrt(v + _EPS) * g.reshape(1, -1, 1, 1) + b.reshape(1, -1, 1, 1)

    def conv(t, w, b, pad):
        y = jax.lax.conv_general_dilated(
            t, w, (1, 1), [(pad, pad), (pad, pad)],
            dimension_numbers=("NCHW", "OIHW", "NCHW"),
            precision=jax.lax.Precision.HIGHEST)
        return y + b.reshape(1, -1, 1, 1)

    h = jax.nn.relu(bn(x, p["g1"], p["b1"]))
    h = jax.nn.relu(bn(conv(h, p["w1"], p["cb1"], 1), p["g2"], p["b2"]))
    c2 = conv(h, p["w2"], p["cb2"], 1)
    skip = conv(x, p["ws"], p["sb"], 0) if p.get("ws") is not None else x
    return skip + lambd * c2


if __name__ == "__main__":
    key = jax.random.PRNGKey(0)
    ks = jax.random.split(key, 4)

    def xavier(k, shape, gain):  # deterministic xavier_uniform-style init (OIHW)
        fan_out = shape[0] * shape[2] * shape[3]
        fan_in = shape[1] * shape[2] * shape[3]
        a = gain * math.sqrt(6.0 / (fan_in + fan_out))
        return jax.random.uniform(k, shape, jnp.float32, -a, a)

    def make_params(k, cin, cout, with_skip):
        kk = jax.random.split(k, 10)
        return {
            "g1": 1.0 + 0.1 * jax.random.normal(kk[0], (cin,), jnp.float32),
            "b1": 0.1 * jax.random.normal(kk[1], (cin,), jnp.float32),
            "w1": xavier(kk[2], (cout, cin, 3, 3), math.sqrt(2.0)),   # gain for 'relu'
            "cb1": 0.1 * jax.random.normal(kk[3], (cout,), jnp.float32),
            "g2": 1.0 + 0.1 * jax.random.normal(kk[4], (cout,), jnp.float32),
            "b2": 0.1 * jax.random.normal(kk[5], (cout,), jnp.float32),
            "w2": xavier(kk[6], (cout, cout, 3, 3), 1.0),             # gain for 'linear'
            "cb2": 0.1 * jax.random.normal(kk[7], (cout,), jnp.float32),
            "ws": xavier(kk[8], (cout, cin, 1, 1), 1.0) if with_skip else None,
            "sb": 0.1 * jax.random.normal(kk[9], (cout,), jnp.float32) if with_skip else None,
        }

    N, H, W = 2, 16, 16

    # Case 1: input_dim=4 != output_dim=8 -> 1x1-conv skip path
    p1 = make_params(ks[1], 4, 8, with_skip=True)
    x1 = jax.random.normal(ks[0], (N, 4, H, W), jnp.float32)
    out1 = jax.block_until_ready(preact_resnet_block(x1, p1, lambd=1.0))
    ref1 = _reference(x1, p1, lambd=1.0)
    assert out1.shape == (N, 8, H, W) and out1.dtype == jnp.float32
    err1 = float(jnp.max(jnp.abs(out1 - ref1)))
    assert err1 < 2e-3, f"conv-skip case mismatch, max abs err = {err1}"

    # Case 2: input_dim == output_dim = 8 -> identity skip
    p2 = make_params(ks[3], 8, 8, with_skip=False)
    x2 = jax.random.normal(ks[2], (N, 8, H, W), jnp.float32)
    out2 = jax.block_until_ready(preact_resnet_block(x2, p2, lambd=0.7))
    ref2 = _reference(x2, p2, lambd=0.7)
    assert out2.shape == (N, 8, H, W) and out2.dtype == jnp.float32
    err2 = float(jnp.max(jnp.abs(out2 - ref2)))
    assert err2 < 2e-3, f"identity-skip case mismatch, max abs err = {err2}"

    print("KERNEL_OK")
</pallas_src>

<mosaic_0001>
module attributes {stable_mosaic.version = 11 : i64} {
  func.func @_preact_resnet_block_kernel(%arg0: memref<32x64xf32, #tpu.memory_space<vmem>>, %arg1: memref<64x64xf32, #tpu.memory_space<vmem>>, %arg2: memref<1x64xf32, #tpu.memory_space<vmem>>, %arg3: memref<1x64xf32, #tpu.memory_space<vmem>>, %arg4: memref<3x64x128xf32, #tpu.memory_space<vmem>>, %arg5: memref<1x128xf32, #tpu.memory_space<vmem>>, %arg6: memref<128x128xf32, #tpu.memory_space<vmem>>, %arg7: memref<1x128xf32, #tpu.memory_space<vmem>>, %arg8: memref<1x128xf32, #tpu.memory_space<vmem>>, %arg9: memref<3x128x128xf32, #tpu.memory_space<vmem>>, %arg10: memref<1x128xf32, #tpu.memory_space<vmem>>, %arg11: memref<64x128xf32, #tpu.memory_space<vmem>>, %arg12: memref<32x128xf32, #tpu.memory_space<vmem>>, %arg13: memref<2x18x128xf32, #tpu.memory_space<vmem>>) attributes {dimension_semantics = [], scalar_prefetch = 0 : i64, scratch_operands = 1 : i64, tpu.core_type = #tpu.core_type<tc>} {
    %cst = arith.constant 0.000000e+00 : f32
    %0 = vector.broadcast %cst : f32 to vector<2x1x128xf32>
    %c0 = arith.constant 0 : index
    %c0_0 = arith.constant 0 : index
    %c0_1 = arith.constant 0 : index
    %1 = vector.load %arg13[%c0, %c0_0, %c0_1] : memref<2x18x128xf32, #tpu.memory_space<vmem>>, vector<2x1x128xf32>
    tpu.vector_store %arg13[%c0, %c0_0, %c0_1], %0 {strides = array<i32>} : memref<2x18x128xf32, #tpu.memory_space<vmem>>, vector<2x1x128xf32>,
    %c0_2 = arith.constant 0 : index
    %c17 = arith.constant 17 : index
    %c0_3 = arith.constant 0 : index
    %2 = vector.load %arg13[%c0_2, %c17, %c0_3] : memref<2x18x128xf32, #tpu.memory_space<vmem>>, vector<2x1x128xf32>
    tpu.vector_store %arg13[%c0_2, %c17, %c0_3], %0 {strides = array<i32>} : memref<2x18x128xf32, #tpu.memory_space<vmem>>, vector<2x1x128xf32>,
    %c0_4 = arith.constant 0 : index
    %c0_5 = arith.constant 0 : index
    %3 = vector.load %arg0[%c0_4, %c0_5] : memref<32x64xf32, #tpu.memory_space<vmem>>, vector<32x64xf32>
    %c0_6 = arith.constant 0 : index
    %c0_7 = arith.constant 0 : index
    %4 = vector.load %arg1[%c0_6, %c0_7] : memref<64x64xf32, #tpu.memory_space<vmem>>, vector<64x64xf32>
    %cst_8 = arith.constant dense<0.000000e+00> : vector<64xf32>
    %5 = vector.multi_reduction <add>, %3, %cst_8 [0] : vector<32x64xf32> to vector<64xf32>
    %6 = vector.shape_cast %5 : vector<64xf32> to vector<1x64xf32>
    %cst_9 = arith.constant dense<0.000000e+00> : vector<1x64xf32>
    %7 = tpu.matmul %6, %4, %cst_9 {dimension_numbers = #tpu.dot_dimension_numbers<[1], [0], [0], [1], [0, 0, 1, 1], [], []>} : vector<1x64xf32>, vector<64x64xf32>, vector<1x64xf32> -> vector<1x64xf32>
    %8 = vector.broadcast %7 : vector<1x64xf32> to vector<32x64xf32>
    %9 = arith.subf %3, %8 : vector<32x64xf32>
    %10 = arith.mulf %9, %9 : vector<32x64xf32>
    %cst_10 = arith.constant dense<0.000000e+00> : vector<64xf32>
    %11 = vector.multi_reduction <add>, %10, %cst_10 [0] : vector<32x64xf32> to vector<64xf32>
    %12 = vector.shape_cast %11 : vector<64xf32> to vector<1x64xf32>
    %cst_11 = arith.constant dense<0.000000e+00> : vector<1x64xf32>
    %13 = tpu.matmul %12, %4, %cst_11 {dimension_numbers = #tpu.dot_dimension_numbers<[1], [0], [0], [1], [0, 0, 1, 1], [], []>} : vector<1x64xf32>, vector<64x64xf32>, vector<1x64xf32> -> vector<1x64xf32>
    %c0_12 = arith.constant 0 : index
    %c0_13 = arith.constant 0 : index
    %14 = vector.load %arg2[%c0_12, %c0_13] : memref<1x64xf32, #tpu.memory_space<vmem>>, vector<1x64xf32>
    %cst_14 = arith.constant 9.99999974E-6 : f32
    %15 = vector.broadcast %cst_14 : f32 to vector<1x64xf32>
    %16 = arith.addf %13, %15 : vector<1x64xf32>
    %17 = math.rsqrt %16 : vector<1x64xf32>
    %18 = arith.mulf %14, %17 : vector<1x64xf32>
    %19 = vector.broadcast %18 : vector<1x64xf32> to vector<32x64xf32>
    %20 = arith.mulf %9, %19 : vector<32x64xf32>
    %c0_15 = arith.constant 0 : index
    %c0_16 = arith.constant 0 : index
    %21 = vector.load %arg3[%c0_15, %c0_16] : memref<1x64xf32, #tpu.memory_space<vmem>>, vector<1x64xf32>
    %22 = vector.broadcast %21 : vector<1x64xf32> to vector<32x64xf32>
    %23 = arith.addf %20, %22 : vector<32x64xf32>
    %cst_17 = arith.constant 0.000000e+00 : f32
    %24 = vector.broadcast %cst_17 : f32 to vector<32x64xf32>
    %25 = arith.maximumf %23, %24 : vector<32x64xf32>
    %c0_18 = arith.constant 0 : index
    %c0_19 = arith.constant 0 : index
    %26 = vector.load %arg5[%c0_18, %c0_19] : memref<1x128xf32, #tpu.memory_space<vmem>>, vector<1x128xf32>
    %27 = vector.shape_cast %25 : vector<32x64xf32> to vector<2x16x64xf32>
    %c0_20 = arith.constant 0 : index
    %c1 = arith.constant 1 : index
    %c0_21 = arith.constant 0 : index
    %28 = vector.load %arg13[%c0_20, %c1, %c0_21] : memref<2x18x128xf32, #tpu.memory_space<vmem>>, vector<2x16x64xf32>
    tpu.vector_store %arg13[%c0_20, %c1, %c0_21], %27 {strides = array<i32>} : memref<2x18x128xf32, #tpu.memory_space<vmem>>, vector<2x16x64xf32>,
    %c0_22 = arith.constant 0 : index
    %c0_23 = arith.constant 0 : index
    %c0_24 = arith.constant 0 : index
    %29 = vector.load %arg13[%c0_22, %c0_23, %c0_24] : memref<2x18x128xf32, #tpu.memory_space<vmem>>, vector<2x16x64xf32>
    %30 = vector.shape_cast %29 : vector<2x16x64xf32> to vector<32x64xf32>
    %c0_25 = arith.constant 0 : index
    %c0_26 = arith.constant 0 : index
    %c0_27 = arith.constant 0 : index
    %31 = vector.load %arg4[%c0_25, %c0_26, %c0_27] : memref<3x64x128xf32, #tpu.memory_space<vmem>>, vector<1x64x128xf32>
    %32 = vector.shape_cast %31 : vector<1x64x128xf32> to vector<64x128xf32>
    %cst_28 = arith.constant dense<0.000000e+00> : vector<32x128xf32>
    %33 = tpu.matmul %30, %32, %cst_28 {dimension_numbers = #tpu.dot_dimension_numbers<[1], [0], [0], [1], [0, 0, 1, 1], [], []>} : vector<32x64xf32>, vector<64x128xf32>, vector<32x128xf32> -> vector<32x128xf32>
    %c0_29 = arith.constant 0 : index
    %c1_30 = arith.constant 1 : index
    %c0_31 = arith.constant 0 : index
    %34 = vector.load %arg13[%c0_29, %c1_30, %c0_31] : memref<2x18x128xf32, #tpu.memory_space<vmem>>, vector<2x16x64xf32>
    %35 = vector.shape_cast %34 : vector<2x16x64xf32> to vector<32x64xf32>
    %c1_32 = arith.constant 1 : index
    %c0_33 = arith.constant 0 : index
    %c0_34 = arith.constant 0 : index
    %36 = vector.load %arg4[%c1_32, %c0_33, %c0_34] : memref<3x64x128xf32, #tpu.memory_space<vmem>>, vector<1x64x128xf32>
    %37 = vector.shape_cast %36 : vector<1x64x128xf32> to vector<64x128xf32>
    %cst_35 = arith.constant dense<0.000000e+00> : vector<32x128xf32>
    %38 = tpu.matmul %35, %37, %cst_35 {dimension_numbers = #tpu.dot_dimension_numbers<[1], [0], [0], [1], [0, 0, 1, 1], [], []>} : vector<32x64xf32>, vector<64x128xf32>, vector<32x128xf32> -> vector<32x128xf32>
    %39 = arith.addf %33, %38 : vector<32x128xf32>
    %c0_36 = arith.constant 0 : index
    %c2 = arith.constant 2 : index
    %c0_37 = arith.constant 0 : index
    %40 = vector.load %arg13[%c0_36, %c2, %c0_37] : memref<2x18x128xf32, #tpu.memory_space<vmem>>, vector<2x16x64xf32>
    %41 = vector.shape_cast %40 : vector<2x16x64xf32> to vector<32x64xf32>
    %c2_38 = arith.constant 2 : index
    %c0_39 = arith.constant 0 : index
    %c0_40 = arith.constant 0 : index
    %42 = vector.load %arg4[%c2_38, %c0_39, %c0_40] : memref<3x64x128xf32, #tpu.memory_space<vmem>>, vector<1x64x128xf32>
    %43 = vector.shape_cast %42 : vector<1x64x128xf32> to vector<64x128xf32>
    %cst_41 = arith.constant dense<0.000000e+00> : vector<32x128xf32>
    %44 = tpu.matmul %41, %43, %cst_41 {dimension_numbers = #tpu.dot_dimension_numbers<[1], [0], [0], [1], [0, 0, 1, 1], [], []>} : vector<32x64xf32>, vector<64x128xf32>, vector<32x128xf32> -> vector<32x128xf32>
    %45 = arith.addf %39, %44 : vector<32x128xf32>
    %46 = vector.broadcast %26 : vector<1x128xf32> to vector<32x128xf32>
    %47 = arith.addf %45, %46 : vector<32x128xf32>
    %c0_42 = arith.constant 0 : index
    %c0_43 = arith.constant 0 : index
    %48 = vector.load %arg6[%c0_42, %c0_43] : memref<128x128xf32, #tpu.memory_space<vmem>>, vector<128x128xf32>
    %cst_44 = arith.constant dense<0.000000e+00> : vector<128xf32>
    %49 = vector.multi_reduction <add>, %47, %cst_44 [0] : vector<32x128xf32> to vector<128xf32>
    %50 = vector.shape_cast %49 : vector<128xf32> to vector<1x128xf32>
    %cst_45 = arith.constant dense<0.000000e+00> : vector<1x128xf32>
    %51 = tpu.matmul %50, %48, %cst_45 {dimension_numbers = #tpu.dot_dimension_numbers<[1], [0], [0], [1], [0, 0, 1, 1], [], []>} : vector<1x128xf32>, vector<128x128xf32>, vector<1x128xf32> -> vector<1x128xf32>
    %52 = vector.broadcast %51 : vector<1x128xf32> to vector<32x128xf32>
    %53 = arith.subf %47, %52 : vector<32x128xf32>
    %54 = arith.mulf %53, %53 : vector<32x128xf32>
    %cst_46 = arith.constant dense<0.000000e+00> : vector<128xf32>
    %55 = vector.multi_reduction <add>, %54, %cst_46 [0] : vector<32x128xf32> to vector<128xf32>
    %56 = vector.shape_cast %55 : vector<128xf32> to vector<1x128xf32>
    %cst_47 = arith.constant dense<0.000000e+00> : vector<1x128xf32>
    %57 = tpu.matmul %56, %48, %cst_47 {dimension_numbers = #tpu.dot_dimension_numbers<[1], [0], [0], [1], [0, 0, 1, 1], [], []>} : vector<1x128xf32>, vector<128x128xf32>, vector<1x128xf32> -> vector<1x128xf32>
    %c0_48 = arith.constant 0 : index
    %c0_49 = arith.constant 0 : index
    %58 = vector.load %arg7[%c0_48, %c0_49] : memref<1x128xf32, #tpu.memory_space<vmem>>, vector<1x128xf32>
    %cst_50 = arith.constant 9.99999974E-6 : f32
    %59 = vector.broadcast %cst_50 : f32 to vector<1x128xf32>
    %60 = arith.addf %57, %59 : vector<1x128xf32>
    %61 = math.rsqrt %60 : vector<1x128xf32>
    %62 = arith.mulf %58, %61 : vector<1x128xf32>
    %63 = vector.broadcast %62 : vector<1x128xf32> to vector<32x128xf32>
    %64 = arith.mulf %53, %63 : vector<32x128xf32>
    %c0_51 = arith.constant 0 : index
    %c0_52 = arith.constant 0 : index
    %65 = vector.load %arg8[%c0_51, %c0_52] : memref<1x128xf32, #tpu.memory_space<vmem>>, vector<1x128xf32>
    %66 = vector.broadcast %65 : vector<1x128xf32> to vector<32x128xf32>
    %67 = arith.addf %64, %66 : vector<32x128xf32>
    %cst_53 = arith.constant 0.000000e+00 : f32
    %68 = vector.broadcast %cst_53 : f32 to vector<32x128xf32>
    %69 = arith.maximumf %67, %68 : vector<32x128xf32>
    %70 = vector.shape_cast %69 : vector<32x128xf32> to vector<2x16x128xf32>
    %c0_54 = arith.constant 0 : index
    %c1_55 = arith.constant 1 : index
    %c0_56 = arith.constant 0 : index
    %71 = vector.load %arg13[%c0_54, %c1_55, %c0_56] : memref<2x18x128xf32, #tpu.memory_space<vmem>>, vector<2x16x128xf32>
    tpu.vector_store %arg13[%c0_54, %c1_55, %c0_56], %70 {strides = array<i32>} : memref<2x18x128xf32, #tpu.memory_space<vmem>>, vector<2x16x128xf32>,
    %c0_57 = arith.constant 0 : index
    %c0_58 = arith.constant 0 : index
    %c0_59 = arith.constant 0 : index
    %72 = vector.load %arg13[%c0_57, %c0_58, %c0_59] : memref<2x18x128xf32, #tpu.memory_space<vmem>>, vector<2x16x128xf32>
    %73 = vector.shape_cast %72 : vector<2x16x128xf32> to vector<32x128xf32>
    %c0_60 = arith.constant 0 : index
    %c0_61 = arith.constant 0 : index
    %c0_62 = arith.constant 0 : index
    %74 = vector.load %arg9[%c0_60, %c0_61, %c0_62] : memref<3x128x128xf32, #tpu.memory_space<vmem>>, vector<1x128x128xf32>
    %75 = vector.shape_cast %74 : vector<1x128x128xf32> to vector<128x128xf32>
    %cst_63 = arith.constant dense<0.000000e+00> : vector<32x128xf32>
    %76 = tpu.matmul %73, %75, %cst_63 {dimension_numbers = #tpu.dot_dimension_numbers<[1], [0], [0], [1], [0, 0, 1, 1], [], []>} : vector<32x128xf32>, vector<128x128xf32>, vector<32x128xf32> -> vector<32x128xf32>
    %c0_64 = arith.constant 0 : index
    %c1_65 = arith.constant 1 : index
    %c0_66 = arith.constant 0 : index
    %77 = vector.load %arg13[%c0_64, %c1_65, %c0_66] : memref<2x18x128xf32, #tpu.memory_space<vmem>>, vector<2x16x128xf32>
    %78 = vector.shape_cast %77 : vector<2x16x128xf32> to vector<32x128xf32>
    %c1_67 = arith.constant 1 : index
    %c0_68 = arith.constant 0 : index
    %c0_69 = arith.constant 0 : index
    %79 = vector.load %arg9[%c1_67, %c0_68, %c0_69] : memref<3x128x128xf32, #tpu.memory_space<vmem>>, vector<1x128x128xf32>
    %80 = vector.shape_cast %79 : vector<1x128x128xf32> to vector<128x128xf32>
    %cst_70 = arith.constant dense<0.000000e+00> : vector<32x128xf32>
    %81 = tpu.matmul %78, %80, %cst_70 {dimension_numbers = #tpu.dot_dimension_numbers<[1], [0], [0], [1], [0, 0, 1, 1], [], []>} : vector<32x128xf32>, vector<128x128xf32>, vector<32x128xf32> -> vector<32x128xf32>
    %82 = arith.addf %76, %81 : vector<32x128xf32>
    %c0_71 = arith.constant 0 : index
    %c2_72 = arith.constant 2 : index
    %c0_73 = arith.constant 0 : index
    %83 = vector.load %arg13[%c0_71, %c2_72, %c0_73] : memref<2x18x128xf32, #tpu.memory_space<vmem>>, vector<2x16x128xf32>
    %84 = vector.shape_cast %83 : vector<2x16x128xf32> to vector<32x128xf32>
    %c2_74 = arith.constant 2 : index
    %c0_75 = arith.constant 0 : index
    %c0_76 = arith.constant 0 : index
    %85 = vector.load %arg9[%c2_74, %c0_75, %c0_76] : memref<3x128x128xf32, #tpu.memory_space<vmem>>, vector<1x128x128xf32>
    %86 = vector.shape_cast %85 : vector<1x128x128xf32> to vector<128x128xf32>
    %cst_77 = arith.constant dense<0.000000e+00> : vector<32x128xf32>
    %87 = tpu.matmul %84, %86, %cst_77 {dimension_numbers = #tpu.dot_dimension_numbers<[1], [0], [0], [1], [0, 0, 1, 1], [], []>} : vector<32x128xf32>, vector<128x128xf32>, vector<32x128xf32> -> vector<32x128xf32>
    %88 = arith.addf %82, %87 : vector<32x128xf32>
    %c0_78 = arith.constant 0 : index
    %c0_79 = arith.constant 0 : index
    %89 = vector.load %arg11[%c0_78, %c0_79] : memref<64x128xf32, #tpu.memory_space<vmem>>, vector<64x128xf32>
    %cst_80 = arith.constant dense<0.000000e+00> : vector<32x128xf32>
    %90 = tpu.matmul %3, %89, %cst_80 {dimension_numbers = #tpu.dot_dimension_numbers<[1], [0], [0], [1], [0, 0, 1, 1], [], []>} : vector<32x64xf32>, vector<64x128xf32>, vector<32x128xf32> -> vector<32x128xf32>
    %91 = arith.addf %90, %88 : vector<32x128xf32>
    %c0_81 = arith.constant 0 : index
    %c0_82 = arith.constant 0 : index
    %92 = vector.load %arg10[%c0_81, %c0_82] : memref<1x128xf32, #tpu.memory_space<vmem>>, vector<1x128xf32>
    %93 = vector.broadcast %92 : vector<1x128xf32> to vector<32x128xf32>
    %94 = arith.addf %91, %93 : vector<32x128xf32>
    %c0_83 = arith.constant 0 : index
    %c0_84 = arith.constant 0 : index
    %95 = vector.load %arg12[%c0_83, %c0_84] : memref<32x128xf32, #tpu.memory_space<vmem>>, vector<32x128xf32>
    tpu.vector_store %arg12[%c0_83, %c0_84], %94 {strides = array<i32>} : memref<32x128xf32, #tpu.memory_space<vmem>>, vector<32x128xf32>,
    return
  }
}

</mosaic_0001>

<llo_original>
// kernel: tpu_custom_call.1
$region0: #{tpu_custom_call.1}
  #allocation0 [shape = 'u32[]', space=smem, size = 0x4, offset = 0x4, fixed_abs, tag = 'smem constant byte address 0x4 - core index']
  #allocation1 [shape = 'u32[144,128]{1,0:T(1,128)}', space=vmem, size = 0x12000, scoped, tag = 'internal scratch']
  #allocation2 [shape = 'f32[2,18,128]{2,1,0:T(8,128)}', space=vmem, size = 0x6000, scoped, tag = 'scratch operand']
  %s0 = inlined_call_operand.hbm [shape: f32[32,64], index: 0, kind: input, shape index: {}]
  %s1 = inlined_call_operand.hbm [shape: f32[64,64], index: 1, kind: input, shape index: {}]
  %s2 = inlined_call_operand.vmem [shape: f32[1,64], index: 2, kind: input, shape index: {}]
  %s3 = inlined_call_operand.vmem [shape: f32[1,64], index: 3, kind: input, shape index: {}]
  %s4 = inlined_call_operand.hbm [shape: f32[3,64,128], index: 4, kind: input, shape index: {}]
  %s5 = inlined_call_operand.vmem [shape: f32[1,128], index: 5, kind: input, shape index: {}]
  %s6 = inlined_call_operand.hbm [shape: f32[128,128], index: 6, kind: input, shape index: {}]
  %s7 = inlined_call_operand.vmem [shape: f32[1,128], index: 7, kind: input, shape index: {}]
  %s8 = inlined_call_operand.vmem [shape: f32[1,128], index: 8, kind: input, shape index: {}]
  %s9 = inlined_call_operand.hbm [shape: f32[3,128,128], index: 9, kind: input, shape index: {}]
  %s10 = inlined_call_operand.vmem [shape: f32[1,128], index: 10, kind: input, shape index: {}]
  %s11 = inlined_call_operand.hbm [shape: f32[64,128], index: 11, kind: input, shape index: {}]
  %s12 = inlined_call_operand.hbm [shape: f32[32,128], index: 12, kind: output, shape index: {}]
  %s13 = sld [smem:[#allocation0]]
  $region82: #{tpu_custom_call.1} parent=0
    _
  %s15 = ssub.s32 1, %s13
  %s16 = scalar_select 0, %s15, %s13
  $region1: #{tpu_custom_call.1} parent=0
    #allocation3 [shape = 'u8[16384]{0}', space=vmem, size = 0x4000, scoped, tag = 'input window, operand 0, single buffered']
    #allocation4 [shape = 's32[1]{0}', space=sflag, size = 0x4, scoped, tag = 'scoped memory for tpu_custom_call.1']
    #allocation5 [shape = 's32[1]{0}', space=sflag, size = 0x4, scoped, tag = 'scoped memory for tpu_custom_call.1']
    #allocation6 [shape = 'u8[32768]{0}', space=vmem, size = 0x8000, scoped, tag = 'input window, operand 1, single buffered']
    #allocation7 [shape = 's32[1]{0}', space=sflag, size = 0x4, scoped, tag = 'scoped memory for tpu_custom_call.1']
    #allocation8 [shape = 'u8[98304]{0}', space=vmem, size = 0x18000, scoped, tag = 'input window, operand 4, single buffered']
    #allocation9 [shape = 'u8[65536]{0}', space=vmem, size = 0x10000, scoped, tag = 'input window, operand 6, single buffered']
    #allocation10 [shape = 's32[1]{0}', space=sflag, size = 0x4, scoped, tag = 'scoped memory for tpu_custom_call.1']
    #allocation11 [shape = 'u8[196608]{0}', space=vmem, size = 0x30000, scoped, tag = 'input window, operand 9, single buffered']
    #allocation12 [shape = 'u8[32768]{0}', space=vmem, size = 0x8000, scoped, tag = 'input window, operand 11, single buffered']
    #allocation13 [shape = 's32[1]{0}', space=sflag, size = 0x4, scoped, tag = 'scoped memory for tpu_custom_call.1']
    #allocation14 [shape = 'u8[16384]{0}', space=vmem, size = 0x4000, scoped, tag = 'output window, operand 0, single buffered']
    %17 = vsyncpa [#allocation4], 0
    %18 = vsyncpa [#allocation7], 0
    %19 = vsyncpa [#allocation10], 0
    %20 = vsyncpa [#allocation13], 0
    %21 = vsyncpa [#allocation5], 0
    // Predicated region
    $region2: #{tpu_custom_call.1} parent=1 // pred_check
      _
    $region3: #{tpu_custom_call.1} parent=1 // pred_check_branch
      %23 = sbr.rel (0) target = $region5
    $region4: #{tpu_custom_call.1} parent=1 // pred_region
      %s25 = ssub.s32 512, 512
      %26 = vsyncadd [#allocation4], %s25
      %s27 = sshll.u32 [#allocation3], 4
      %s28 = int_to_ptr.vmem [resolvable:$true] %s27
      %33 = dma.hbm_to_vmem [thread:$0]  %s0, 512, %s28, [#allocation4], 128, 128, 8
    $region5: #{tpu_custom_call.1} parent=1 // pred_fallthru
      _
    // Predicated region
    $region6: #{tpu_custom_call.1} parent=1 // pred_check
      _
    $region7: #{tpu_custom_call.1} parent=1 // pred_check_branch
      %35 = sbr.rel (0) target = $region9
    $region8: #{tpu_custom_call.1} parent=1 // pred_region
      %s37 = ssub.s32 1024, 1024
      %38 = vsyncadd [#allocation7], %s37
      %s39 = sshll.u32 [#allocation6], 4
      %s40 = int_to_ptr.vmem [resolvable:$true] %s39
      %45 = dma.hbm_to_vmem [thread:$0]  %s1, 1024, %s40, [#allocation7], 128, 128, 8
    $region9: #{tpu_custom_call.1} parent=1 // pred_fallthru
      _
    // Predicated region
    $region10: #{tpu_custom_call.1} parent=1 // pred_check
      _
    $region11: #{tpu_custom_call.1} parent=1 // pred_check_branch
      %47 = sbr.rel (0) target = $region13
    $region12: #{tpu_custom_call.1} parent=1 // pred_region
      _
    $region13: #{tpu_custom_call.1} parent=1 // pred_fallthru
      _
    // Predicated region
    $region14: #{tpu_custom_call.1} parent=1 // pred_check
      _
    $region15: #{tpu_custom_call.1} parent=1 // pred_check_branch
      %49 = sbr.rel (0) target = $region17
    $region16: #{tpu_custom_call.1} parent=1 // pred_region
      _
    $region17: #{tpu_custom_call.1} parent=1 // pred_fallthru
      _
    // Predicated region
    $region18: #{tpu_custom_call.1} parent=1 // pred_check
      _
    $region19: #{tpu_custom_call.1} parent=1 // pred_check_branch
      %51 = sbr.rel (0) target = $region21
    $region20: #{tpu_custom_call.1} parent=1 // pred_region
      %s53 = ssub.s32 3072, 3072
      %54 = vsyncadd [#allocation7], %s53
      %s55 = sshll.u32 [#allocation8], 4
      %s56 = int_to_ptr.vmem [resolvable:$true] %s55
      %61 = dma.hbm_to_vmem [thread:$0]  %s4, 3072, %s56, [#allocation7], 128, 128, 8
    $region21: #{tpu_custom_call.1} parent=1 // pred_fallthru
      _
    // Predicated region
    $region22: #{tpu_custom_call.1} parent=1 // pred_check
      _
    $region23: #{tpu_custom_call.1} parent=1 // pred_check_branch
      %63 = sbr.rel (0) target = $region25
    $region24: #{tpu_custom_call.1} parent=1 // pred_region
      _
    $region25: #{tpu_custom_call.1} parent=1 // pred_fallthru
      _
    // Predicated region
    $region26: #{tpu_custom_call.1} parent=1 // pred_check
      _
    $region27: #{tpu_custom_call.1} parent=1 // pred_check_branch
      %65 = sbr.rel (0) target = $region29
    $region28: #{tpu_custom_call.1} parent=1 // pred_region
      %s67 = ssub.s32 2048, 2048
      %68 = vsyncadd [#allocation10], %s67
      %s69 = sshll.u32 [#allocation9], 4
      %s70 = int_to_ptr.vmem [resolvable:$true] %s69
      %75 = dma.hbm_to_vmem [thread:$0]  %s6, 2048, %s70, [#allocation10], 128, 128, 8
    $region29: #{tpu_custom_call.1} parent=1 // pred_fallthru
      _
    // Predicated region
    $region30: #{tpu_custom_call.1} parent=1 // pred_check
      _
    $region31: #{tpu_custom_call.1} parent=1 // pred_check_branch
      %77 = sbr.rel (0) target = $region33
    $region32: #{tpu_custom_call.1} parent=1 // pred_region
      _
    $region33: #{tpu_custom_call.1} parent=1 // pred_fallthru
      _
    // Predicated region
    $region34: #{tpu_custom_call.1} parent=1 // pred_check
      _
    $region35: #{tpu_custom_call.1} parent=1 // pred_check_branch
      %79 = sbr.rel (0) target = $region37
    $region36: #{tpu_custom_call.1} parent=1 // pred_region
      _
    $region37: #{tpu_custom_call.1} parent=1 // pred_fallthru
      _
    // Predicated region
    $region38: #{tpu_custom_call.1} parent=1 // pred_check
      _
    $region39: #{tpu_custom_call.1} parent=1 // pred_check_branch
      %81 = sbr.rel (0) target = $region41
    $region40: #{tpu_custom_call.1} parent=1 // pred_region
      %s83 = ssub.s32 6144, 6144
      %84 = vsyncadd [#allocation10], %s83
      %s85 = sshll.u32 [#allocation11], 4
      %s86 = int_to_ptr.vmem [resolvable:$true] %s85
      %91 = dma.hbm_to_vmem [thread:$0]  %s9, 6144, %s86, [#allocation10], 128, 128, 8
    $region41: #{tpu_custom_call.1} parent=1 // pred_fallthru
      _
    // Predicated region
    $region42: #{tpu_custom_call.1} parent=1 // pred_check
      _
    $region43: #{tpu_custom_call.1} parent=1 // pred_check_branch
      %93 = sbr.rel (0) target = $region45
    $region44: #{tpu_custom_call.1} parent=1 // pred_region
      _
    $region45: #{tpu_custom_call.1} parent=1 // pred_fallthru
      _
    // Predicated region
    $region46: #{tpu_custom_call.1} parent=1 // pred_check
      _
    $region47: #{tpu_custom_call.1} parent=1 // pred_check_branch
      %95 = sbr.rel (0) target = $region49
    $region48: #{tpu_custom_call.1} parent=1 // pred_region
      %s97 = ssub.s32 1024, 1024
      %98 = vsyncadd [#allocation13], %s97
      %s99 = sshll.u32 [#allocation12], 4
      %s100 = int_to_ptr.vmem [resolvable:$true] %s99
      %105 = dma.hbm_to_vmem [thread:$0]  %s11, 1024, %s100, [#allocation13], 128, 128, 8
    $region49: #{tpu_custom_call.1} parent=1 // pred_fallthru
      _
    // Predicated region
    $region50: #{tpu_custom_call.1} parent=1 // pred_check
      _
    $region51: #{tpu_custom_call.1} parent=1 // pred_check_branch
      %107 = sbr.rel (0) target = $region53
    $region52: #{tpu_custom_call.1} parent=1 // pred_region
      %108 = dma.done [#allocation4], 512
    $region53: #{tpu_custom_call.1} parent=1 // pred_fallthru
      _
    // Predicated region
    $region54: #{tpu_custom_call.1} parent=1 // pred_check
      _
    $region55: #{tpu_custom_call.1} parent=1 // pred_check_branch
      %110 = sbr.rel (0) target = $region57
    $region56: #{tpu_custom_call.1} parent=1 // pred_region
      %111 = dma.done [#allocation7], 1024
    $region57: #{tpu_custom_call.1} parent=1 // pred_fallthru
      _
    // Predicated region
    $region58: #{tpu_custom_call.1} parent=1 // pred_check
      _
    $region59: #{tpu_custom_call.1} parent=1 // pred_check_branch
      %113 = sbr.rel (0) target = $region61
    $region60: #{tpu_custom_call.1} parent=1 // pred_region
      %114 = dma.done [#allocation7], 3072
    $region61: #{tpu_custom_call.1} parent=1 // pred_fallthru
      _
    // Predicated region
    $region62: #{tpu_custom_call.1} parent=1 // pred_check
      _
    $region63: #{tpu_custom_call.1} parent=1 // pred_check_branch
      %116 = sbr.rel (0) target = $region65
    $region64: #{tpu_custom_call.1} parent=1 // pred_region
      %117 = dma.done [#allocation10], 2048
    $region65: #{tpu_custom_call.1} parent=1 // pred_fallthru
      _
    // Predicated region
    $region66: #{tpu_custom_call.1} parent=1 // pred_check
      _
    $region67: #{tpu_custom_call.1} parent=1 // pred_check_branch
      %119 = sbr.rel (0) target = $region69
    $region68: #{tpu_custom_call.1} parent=1 // pred_region
      %120 = dma.done [#allocation10], 6144
    $region69: #{tpu_custom_call.1} parent=1 // pred_fallthru
      _
    // Predicated region
    $region70: #{tpu_custom_call.1} parent=1 // pred_check
      _
    $region71: #{tpu_custom_call.1} parent=1 // pred_check_branch
      %122 = sbr.rel (0) target = $region73
    $region72: #{tpu_custom_call.1} parent=1 // pred_region
      %123 = dma.done [#allocation13], 1024
    $region73: #{tpu_custom_call.1} parent=1 // pred_fallthru
      _
    %124 = vst [vmem:[#allocation2] sm:$0x1] 0.0
    %125 = vst [vmem:[#allocation2 + $0x18] sm:$0x1] 0.0
    %126 = vst [vmem:[#allocation2 + $0x11] sm:$0x1] 0.0
    %127 = vst [vmem:[#allocation2 + $0x29] sm:$0x1] 0.0
    %v128 = vld [vmem:[#allocation3] sm:$0xff]
    %v129 = vld [vmem:[#allocation3 + $0x8] sm:$0xff]
    %v130 = vld [vmem:[#allocation3 + $0x10] sm:$0xff]
    %v131 = vld [vmem:[#allocation3 + $0x18] sm:$0xff]
    %v132 = vld [vmem:[#allocation6] sm:$0xff]
    %v133 = vld [vmem:[#allocation6 + $0x8] sm:$0xff]
    %v134 = vld [vmem:[#allocation6 + $0x10] sm:$0xff]
    %v135 = vld [vmem:[#allocation6 + $0x18] sm:$0xff]
    %v136 = vld [vmem:[#allocation6 + $0x20] sm:$0xff]
    %v137 = vld [vmem:[#allocation6 + $0x28] sm:$0xff]
    %v138 = vld [vmem:[#allocation6 + $0x30] sm:$0xff]
    %v139 = vld [vmem:[#allocation6 + $0x38] sm:$0xff]
    %vm140 = vcmask 523264
    %v141 = vsel %vm140, %v128, 0.0
    %v142 = vsel %vm140, %v129, 0.0
    %v143 = vadd.f32 %v141, %v142
    %v144 = vsel %vm140, %v130, 0.0
    %v145 = vadd.f32 %v143, %v144
    %v146 = vsel %vm140, %v131, 0.0
    %v147 = vadd.f32 %v145, %v146
    %v148 = vrot.slane %v147, 4
    %v149 = vadd.f32 %v147, %v148
    %v150 = vrot.slane %v149, 2
    %v151 = vadd.f32 %v149, %v150
    %v152 = vrot.slane %v151, 1
    %v153 = vadd.f32 %v151, %v152
    %v155 = vsel %vm140, %v153, 0
    %157 = vmatprep.subr.mxu0 0.0
    %158 = vmatpush1.msra.mxu0 %v132
    %159 = vmatprep.subr.mxu0 0.0
    %160 = vmatpush1.msra.mxu0 %v133
    %161 = vmatprep.subr.mxu0 0.0
    %162 = vmatpush1.msra.mxu0 %v134
    %163 = vmatprep.subr.mxu0 0.0
    %164 = vmatpush1.msra.mxu0 %v135
    %165 = vmatprep.subr.mxu0 0.0
    %166 = vmatpush1.msra.mxu0 %v136
    %167 = vmatprep.subr.mxu0 0.0
    %168 = vmatpush1.msra.mxu0 %v137
    %169 = vmatprep.subr.mxu0 0.0
    %170 = vmatpush1.msra.mxu0 %v138
    %171 = vmatprep.subr.mxu0 0.0
    %172 = vmatpush1.msra.mxu0 %v139
    %173 = vmatprep.subr.mxu0 0.0
    %174 = vmatpush1.msra.mxu0 0.0
    %175 = vmatprep.subr.mxu0 0.0
    %176 = vmatpush1.msra.mxu0 0.0
    %177 = vmatprep.subr.mxu0 0.0
    %178 = vmatpush1.msra.mxu0 0.0
    %179 = vmatprep.subr.mxu0 0.0
    %180 = vmatpush1.msra.mxu0 0.0
    %181 = vmatprep.subr.mxu0 0.0
    %182 = vmatpush1.msra.mxu0 0.0
    %183 = vmatprep.subr.mxu0 0.0
    %184 = vmatpush1.msra.mxu0 0.0
    %185 = vmatprep.subr.mxu0 0.0
    %186 = vmatpush1.msra.mxu0 0.0
    %187 = vmatprep.subr.mxu0 0.0
    %188 = vmatpush1.msra.mxu0 0.0
    %189 = vmatprep.subr.mxu0 0.0
    %190 = vmatpush1.msra.mxu0 0.0
    %191 = vmatprep.subr.mxu0 0.0
    %192 = vmatpush1.msra.mxu0 0.0
    %193 = vmatprep.subr.mxu0 0.0
    %194 = vmatpush1.msra.mxu0 0.0
    %195 = vmatprep.subr.mxu0 0.0
    %196 = vmatpush1.msra.mxu0 0.0
    %197 = vmatprep.subr.mxu0 0.0
    %198 = vmatpush1.msra.mxu0 0.0
    %199 = vmatprep.subr.mxu0 0.0
    %200 = vmatpush1.msra.mxu0 0.0
    %201 = vmatprep.subr.mxu0 0.0
    %202 = vmatpush1.msra.mxu0 0.0
    %203 = vmatprep.subr.mxu0 0.0
    %204 = vmatpush1.msra.mxu0 0.0
    %205 = vmatprep.subr.mxu0 0.0
    %206 = vmatpush1.msra.mxu0 0.0
    %207 = vmatprep.subr.mxu0 0.0
    %208 = vmatpush1.msra.mxu0 0.0
    %209 = vmatprep.subr.mxu0 0.0
    %210 = vmatpush1.msra.mxu0 0.0
    %211 = vmatprep.subr.mxu0 0.0
    %212 = vmatpush1.msra.mxu0 0.0
    %213 = vmatprep.subr.mxu0 0.0
    %214 = vmatpush1.msra.mxu0 0.0
    %215 = vmatprep.subr.mxu0 0.0
    %216 = vmatpush1.msra.mxu0 0.0
    %217 = vmatprep.subr.mxu0 0.0
    %218 = vmatpush1.msra.mxu0 0.0
    %219 = vmatprep.subr.mxu0 0.0
    %220 = vmatpush1.msra.mxu0 0.0
    %221 = vmatprep.mubr.f32.mxu0 0.0
    %222 = vmatmul.mubr.f32.gmra.mrb[0].mxu0 %v155
    %v223 = vpop.f32.mrb[0].mxu0
    %v224 = vadd.f32 0.0, %v223
    %v225 = vpop.f32.mrb[0].mxu0
    %226 = vdwg.mxu0
    %v227 = vlaneseq
    %v228 = vshrl.u32 %v227, 7
    %v229 = vsub.s32 0, %v228
    %v230 = vrot.slane %v224, %v229
    %v231 = vsub.f32 %v128, %v230
    %v232 = vsub.f32 %v129, %v230
    %v233 = vsub.f32 %v130, %v230
    %v234 = vsub.f32 %v131, %v230
    %v235 = vmul.f32 %v231, %v231
    %v236 = vmul.f32 %v232, %v232
    %v237 = vmul.f32 %v233, %v233
    %v238 = vmul.f32 %v234, %v234
    %v239 = vsel %vm140, %v235, 0.0
    %v240 = vsel %vm140, %v236, 0.0
    %v241 = vadd.f32 %v239, %v240
    %v242 = vsel %vm140, %v237, 0.0
    %v243 = vadd.f32 %v241, %v242
    %v244 = vsel %vm140, %v238, 0.0
    %v245 = vadd.f32 %v243, %v244
    %v246 = vrot.slane %v245, 4
    %v247 = vadd.f32 %v245, %v246
    %v248 = vrot.slane %v247, 2
    %v249 = vadd.f32 %v247, %v248
    %v250 = vrot.slane %v249, 1
    %v251 = vadd.f32 %v249, %v250
    %v252 = vld [vmem:[%s2] sm:$0x1]
    %v254 = vsel %vm140, %v251, 0
    %256 = vmatprep.subr.mxu0 0.0
    %257 = vmatpush1.msra.mxu0 %v132
    %258 = vmatprep.subr.mxu0 0.0
    %259 = vmatpush1.msra.mxu0 %v133
    %260 = vmatprep.subr.mxu0 0.0
    %261 = vmatpush1.msra.mxu0 %v134
    %262 = vmatprep.subr.mxu0 0.0
    %263 = vmatpush1.msra.mxu0 %v135
    %264 = vmatprep.subr.mxu0 0.0
    %265 = vmatpush1.msra.mxu0 %v136
    %266 = vmatprep.subr.mxu0 0.0
    %267 = vmatpush1.msra.mxu0 %v137
    %268 = vmatprep.subr.mxu0 0.0
    %269 = vmatpush1.msra.mxu0 %v138
    %270 = vmatprep.subr.mxu0 0.0
    %271 = vmatpush1.msra.mxu0 %v139
    %272 = vmatprep.subr.mxu0 0.0
    %273 = vmatpush1.msra.mxu0 0.0
    %274 = vmatprep.subr.mxu0 0.0
    %275 = vmatpush1.msra.mxu0 0.0
    %276 = vmatprep.subr.mxu0 0.0
    %277 = vmatpush1.msra.mxu0 0.0
    %278 = vmatprep.subr.mxu0 0.0
    %279 = vmatpush1.msra.mxu0 0.0
    %280 = vmatprep.subr.mxu0 0.0
    %281 = vmatpush1.msra.mxu0 0.0
    %282 = vmatprep.subr.mxu0 0.0
    %283 = vmatpush1.msra.mxu0 0.0
    %284 = vmatprep.subr.mxu0 0.0
    %285 = vmatpush1.msra.mxu0 0.0
    %286 = vmatprep.subr.mxu0 0.0
    %287 = vmatpush1.msra.mxu0 0.0
    %288 = vmatprep.subr.mxu0 0.0
    %289 = vmatpush1.msra.mxu0 0.0
    %290 = vmatprep.subr.mxu0 0.0
    %291 = vmatpush1.msra.mxu0 0.0
    %292 = vmatprep.subr.mxu0 0.0
    %293 = vmatpush1.msra.mxu0 0.0
    %294 = vmatprep.subr.mxu0 0.0
    %295 = vmatpush1.msra.mxu0 0.0
    %296 = vmatprep.subr.mxu0 0.0
    %297 = vmatpush1.msra.mxu0 0.0
    %298 = vmatprep.subr.mxu0 0.0
    %299 = vmatpush1.msra.mxu0 0.0
    %300 = vmatprep.subr.mxu0 0.0
    %301 = vmatpush1.msra.mxu0 0.0
    %302 = vmatprep.subr.mxu0 0.0
    %303 = vmatpush1.msra.mxu0 0.0
    %304 = vmatprep.subr.mxu0 0.0
    %305 = vmatpush1.msra.mxu0 0.0
    %306 = vmatprep.subr.mxu0 0.0
    %307 = vmatpush1.msra.mxu0 0.0
    %308 = vmatprep.subr.mxu0 0.0
    %309 = vmatpush1.msra.mxu0 0.0
    %310 = vmatprep.subr.mxu0 0.0
    %311 = vmatpush1.msra.mxu0 0.0
    %312 = vmatprep.subr.mxu0 0.0
    %313 = vmatpush1.msra.mxu0 0.0
    %314 = vmatprep.subr.mxu0 0.0
    %315 = vmatpush1.msra.mxu0 0.0
    %316 = vmatprep.subr.mxu0 0.0
    %317 = vmatpush1.msra.mxu0 0.0
    %318 = vmatprep.subr.mxu0 0.0
    %319 = vmatpush1.msra.mxu0 0.0
    %320 = vmatprep.mubr.f32.mxu0 0.0
    %321 = vmatmul.mubr.f32.gmra.mrb[0].mxu0 %v254
    %v322 = vpop.f32.mrb[0].mxu0
    %v323 = vadd.f32 1e-05, %v322
    %v324 = vpop.f32.mrb[0].mxu0
    %325 = vdwg.mxu0
    %v326 = vrsqrt.pop %v323
    %v327 = vmul.f32 %v252, %v326
    %v329 = vlaneseq
    %v330 = vshrl.u32 %v329, 7
    %v331 = vsub.s32 0, %v330
    %v332 = vrot.slane %v327, %v331
    %v334 = vmul.f32 %v231, %v332
    %v335 = vmul.f32 %v232, %v332
    %v336 = vmul.f32 %v233, %v332
    %v337 = vmul.f32 %v234, %v332
    %v338 = vld [vmem:[%s3] sm:$0x1]
    %v340 = vlaneseq
    %v341 = vshrl.u32 %v340, 7
    %v342 = vsub.s32 0, %v341
    %v343 = vrot.slane %v338, %v342
    %v345 = vadd.f32 %v334, %v343
    %v346 = vadd.f32 %v335, %v343
    %v347 = vadd.f32 %v336, %v343
    %v348 = vadd.f32 %v337, %v343
    %v349 = vmax.f32 %v345, 0.0
    %v350 = vmax.f32 %v346, 0.0
    %v351 = vmax.f32 %v347, 0.0
    %v352 = vmax.f32 %v348, 0.0
    %v353 = vld [vmem:[%s5] sm:$0x1]
    %354 = vst.msk [vmem:[#allocation2 + $0x1] sm:$0xff] %vm140, %v349
    %355 = vst.msk [vmem:[#allocation2 + $0x9] sm:$0xff] %vm140, %v350
    %356 = vst.msk [vmem:[#allocation2 + $0x19] sm:$0xff] %vm140, %v351
    %357 = vst.msk [vmem:[#allocation2 + $0x21] sm:$0xff] %vm140, %v352
    %v358 = vld [vmem:[#allocation2] sm:$0xff]
    %v359 = vld [vmem:[#allocation2 + $0x8] sm:$0xff]
    %v360 = vld [vmem:[#allocation2 + $0x18] sm:$0xff]
    %v361 = vld [vmem:[#allocation2 + $0x20] sm:$0xff]
    %v362 = vld [vmem:[#allocation8] sm:$0xff]
    %v363 = vld [vmem:[#allocation8 + $0x8] sm:$0xff]
    %v364 = vld [vmem:[#allocation8 + $0x10] sm:$0xff]
    %v365 = vld [vmem:[#allocation8 + $0x18] sm:$0xff]
    %v366 = vld [vmem:[#allocation8 + $0x20] sm:$0xff]
    %v367 = vld [vmem:[#allocation8 + $0x28] sm:$0xff]
    %v368 = vld [vmem:[#allocation8 + $0x30] sm:$0xff]
    %v369 = vld [vmem:[#allocation8 + $0x38] sm:$0xff]
    %v370 = vld [vmem:[#allocation2 + $0x1] sm:$0xff]
    %v371 = vld [vmem:[#allocation2 + $0x9] sm:$0xff]
    %v372 = vld [vmem:[#allocation2 + $0x19] sm:$0xff]
    %v373 = vld [vmem:[#allocation2 + $0x21] sm:$0xff]
    %s374 = scalar_lea.vmem [#allocation8], 64
    %v375 = vld [vmem:[%s374] sm:$0xff]
    %v376 = vld [vmem:[%s374 + $0x8] sm:$0xff]
    %v377 = vld [vmem:[%s374 + $0x10] sm:$0xff]
    %v378 = vld [vmem:[%s374 + $0x18] sm:$0xff]
    %v379 = vld [vmem:[%s374 + $0x20] sm:$0xff]
    %v380 = vld [vmem:[%s374 + $0x28] sm:$0xff]
    %v381 = vld [vmem:[%s374 + $0x30] sm:$0xff]
    %v382 = vld [vmem:[%s374 + $0x38] sm:$0xff]
    %v384 = vsel %vm140, %v370, 0
    %v387 = vsel %vm140, %v371, 0
    %v390 = vsel %vm140, %v372, 0
    %v393 = vsel %vm140, %v373, 0
    %395 = vmatprep.subr.mxu0 0.0
    %396 = vmatpush1.msra.mxu0 %v375
    %397 = vmatprep.subr.mxu0 0.0
    %398 = vmatpush1.msra.mxu0 %v376
    %399 = vmatprep.subr.mxu0 0.0
    %400 = vmatpush1.msra.mxu0 %v377
    %401 = vmatprep.subr.mxu0 0.0
    %402 = vmatpush1.msra.mxu0 %v378
    %403 = vmatprep.subr.mxu0 0.0
    %404 = vmatpush1.msra.mxu0 %v379
    %405 = vmatprep.subr.mxu0 0.0
    %406 = vmatpush1.msra.mxu0 %v380
    %407 = vmatprep.subr.mxu0 0.0
    %408 = vmatpush1.msra.mxu0 %v381
    %409 = vmatprep.subr.mxu0 0.0
    %410 = vmatpush1.msra.mxu0 %v382
    %411 = vmatprep.subr.mxu0 0.0
    %412 = vmatpush1.msra.mxu0 0.0
    %413 = vmatprep.subr.mxu0 0.0
    %414 = vmatpush1.msra.mxu0 0.0
    %415 = vmatprep.subr.mxu0 0.0
    %416 = vmatpush1.msra.mxu0 0.0
    %417 = vmatprep.subr.mxu0 0.0
    %418 = vmatpush1.msra.mxu0 0.0
    %419 = vmatprep.subr.mxu0 0.0
    %420 = vmatpush1.msra.mxu0 0.0
    %421 = vmatprep.subr.mxu0 0.0
    %422 = vmatpush1.msra.mxu0 0.0
    %423 = vmatprep.subr.mxu0 0.0
    %424 = vmatpush1.msra.mxu0 0.0
    %425 = vmatprep.subr.mxu0 0.0
    %426 = vmatpush1.msra.mxu0 0.0
    %427 = vmatprep.subr.mxu0 0.0
    %428 = vmatpush1.msra.mxu0 0.0
    %429 = vmatprep.subr.mxu0 0.0
    %430 = vmatpush1.msra.mxu0 0.0
    %431 = vmatprep.subr.mxu0 0.0
    %432 = vmatpush1.msra.mxu0 0.0
    %433 = vmatprep.subr.mxu0 0.0
    %434 = vmatpush1.msra.mxu0 0.0
    %435 = vmatprep.subr.mxu0 0.0
    %436 = vmatpush1.msra.mxu0 0.0
    %437 = vmatprep.subr.mxu0 0.0
    %438 = vmatpush1.msra.mxu0 0.0
    %439 = vmatprep.subr.mxu0 0.0
    %440 = vmatpush1.msra.mxu0 0.0
    %441 = vmatprep.subr.mxu0 0.0
    %442 = vmatpush1.msra.mxu0 0.0
    %443 = vmatprep.subr.mxu0 0.0
    %444 = vmatpush1.msra.mxu0 0.0
    %445 = vmatprep.subr.mxu0 0.0
    %446 = vmatpush1.msra.mxu0 0.0
    %447 = vmatprep.subr.mxu0 0.0
    %448 = vmatpush1.msra.mxu0 0.0
    %449 = vmatprep.subr.mxu0 0.0
    %450 = vmatpush1.msra.mxu0 0.0
    %451 = vmatprep.subr.mxu0 0.0
    %452 = vmatpush1.msra.mxu0 0.0
    %453 = vmatprep.subr.mxu0 0.0
    %454 = vmatpush1.msra.mxu0 0.0
    %455 = vmatprep.subr.mxu0 0.0
    %456 = vmatpush1.msra.mxu0 0.0
    %457 = vmatprep.subr.mxu0 0.0
    %458 = vmatpush1.msra.mxu0 0.0
    %459 = vmatprep.mubr.f32.mxu0 0.0
    %460 = vmatmul.mubr.f32.gmra.mrb[0].mxu0 %v384
    %v461 = vpop.f32.mrb[0].mxu0
    %v462 = vadd.f32 0.0, %v461
    %v463 = vpop.f32.mrb[0].mxu0
    %464 = vmatprep.mubr.f32.mxu0 0.0
    %465 = vmatmul.mubr.f32.gmra.mrb[0].mxu0 %v387
    %v466 = vpop.f32.mrb[0].mxu0
    %v467 = vadd.f32 0.0, %v466
    %v468 = vpop.f32.mrb[0].mxu0
    %469 = vmatprep.mubr.f32.mxu0 0.0
    %470 = vmatmul.mubr.f32.gmra.mrb[0].mxu0 %v390
    %v471 = vpop.f32.mrb[0].mxu0
    %v472 = vadd.f32 0.0, %v471
    %v473 = vpop.f32.mrb[0].mxu0
    %474 = vmatprep.mubr.f32.mxu0 0.0
    %475 = vmatmul.mubr.f32.gmra.mrb[0].mxu0 %v393
    %v476 = vpop.f32.mrb[0].mxu0
    %v477 = vadd.f32 0.0, %v476
    %v478 = vpop.f32.mrb[0].mxu0
    %479 = vdwg.mxu0
    %v481 = vsel %vm140, %v358, 0
    %v484 = vsel %vm140, %v359, 0
    %v487 = vsel %vm140, %v360, 0
    %v490 = vsel %vm140, %v361, 0
    %492 = vmatprep.subr.mxu0 0.0
    %493 = vmatpush1.msra.mxu0 %v362
    %494 = vmatprep.subr.mxu0 0.0
    %495 = vmatpush1.msra.mxu0 %v363
    %496 = vmatprep.subr.mxu0 0.0
    %497 = vmatpush1.msra.mxu0 %v364
    %498 = vmatprep.subr.mxu0 0.0
    %499 = vmatpush1.msra.mxu0 %v365
    %500 = vmatprep.subr.mxu0 0.0
    %501 = vmatpush1.msra.mxu0 %v366
    %502 = vmatprep.subr.mxu0 0.0
    %503 = vmatpush1.msra.mxu0 %v367
    %504 = vmatprep.subr.mxu0 0.0
    %505 = vmatpush1.msra.mxu0 %v368
    %506 = vmatprep.subr.mxu0 0.0
    %507 = vmatpush1.msra.mxu0 %v369
    %508 = vmatprep.subr.mxu0 0.0
    %509 = vmatpush1.msra.mxu0 0.0
    %510 = vmatprep.subr.mxu0 0.0
    %511 = vmatpush1.msra.mxu0 0.0
    %512 = vmatprep.subr.mxu0 0.0
    %513 = vmatpush1.msra.mxu0 0.0
    %514 = vmatprep.subr.mxu0 0.0
    %515 = vmatpush1.msra.mxu0 0.0
    %516 = vmatprep.subr.mxu0 0.0
    %517 = vmatpush1.msra.mxu0 0.0
    %518 = vmatprep.subr.mxu0 0.0
    %519 = vmatpush1.msra.mxu0 0.0
    %520 = vmatprep.subr.mxu0 0.0
    %521 = vmatpush1.msra.mxu0 0.0
    %522 = vmatprep.subr.mxu0 0.0
    %523 = vmatpush1.msra.mxu0 0.0
    %524 = vmatprep.subr.mxu0 0.0
    %525 = vmatpush1.msra.mxu0 0.0
    %526 = vmatprep.subr.mxu0 0.0
    %527 = vmatpush1.msra.mxu0 0.0
    %528 = vmatprep.subr.mxu0 0.0
    %529 = vmatpush1.msra.mxu0 0.0
    %530 = vmatprep.subr.mxu0 0.0
    %531 = vmatpush1.msra.mxu0 0.0
    %532 = vmatprep.subr.mxu0 0.0
    %533 = vmatpush1.msra.mxu0 0.0
    %534 = vmatprep.subr.mxu0 0.0
    %535 = vmatpush1.msra.mxu0 0.0
    %536 = vmatprep.subr.mxu0 0.0
    %537 = vmatpush1.msra.mxu0 0.0
    %538 = vmatprep.subr.mxu0 0.0
    %539 = vmatpush1.msra.mxu0 0.0
    %540 = vmatprep.subr.mxu0 0.0
    %541 = vmatpush1.msra.mxu0 0.0
    %542 = vmatprep.subr.mxu0 0.0
    %543 = vmatpush1.msra.mxu0 0.0
    %544 = vmatprep.subr.mxu0 0.0
    %545 = vmatpush1.msra.mxu0 0.0
    %546 = vmatprep.subr.mxu0 0.0
    %547 = vmatpush1.msra.mxu0 0.0
    %548 = vmatprep.subr.mxu0 0.0
    %549 = vmatpush1.msra.mxu0 0.0
    %550 = vmatprep.subr.mxu0 0.0
    %551 = vmatpush1.msra.mxu0 0.0
    %552 = vmatprep.subr.mxu0 0.0
    %553 = vmatpush1.msra.mxu0 0.0
    %554 = vmatprep.subr.mxu0 0.0
    %555 = vmatpush1.msra.mxu0 0.0
    %556 = vmatprep.mubr.f32.mxu0 0.0
    %557 = vmatmul.mubr.f32.gmra.mrb[0].mxu0 %v481
    %v558 = vpop.f32.mrb[0].mxu0
    %v559 = vadd.f32 %v462, %v558
    %v560 = vpop.f32.mrb[0].mxu0
    %561 = vmatprep.mubr.f32.mxu0 0.0
    %562 = vmatmul.mubr.f32.gmra.mrb[0].mxu0 %v484
    %v563 = vpop.f32.mrb[0].mxu0
    %v564 = vadd.f32 %v467, %v563
    %v565 = vpop.f32.mrb[0].mxu0
    %566 = vmatprep.mubr.f32.mxu0 0.0
    %567 = vmatmul.mubr.f32.gmra.mrb[0].mxu0 %v487
    %v568 = vpop.f32.mrb[0].mxu0
    %v569 = vadd.f32 %v472, %v568
    %v570 = vpop.f32.mrb[0].mxu0
    %571 = vmatprep.mubr.f32.mxu0 0.0
    %572 = vmatmul.mubr.f32.gmra.mrb[0].mxu0 %v490
    %v573 = vpop.f32.mrb[0].mxu0
    %v574 = vadd.f32 %v477, %v573
    %v575 = vpop.f32.mrb[0].mxu0
    %576 = vdwg.mxu0
    %v577 = vld [vmem:[#allocation2 + $0x2] sm:$0xff]
    %v578 = vld [vmem:[#allocation2 + $0xa] sm:$0xff]
    %v579 = vld [vmem:[#allocation2 + $0x1a] sm:$0xff]
    %v580 = vld [vmem:[#allocation2 + $0x22] sm:$0xff]
    %s581 = scalar_lea.vmem [#allocation8], 128
    %v582 = vld [vmem:[%s581] sm:$0xff]
    %v583 = vld [vmem:[%s581 + $0x8] sm:$0xff]
    %v584 = vld [vmem:[%s581 + $0x10] sm:$0xff]
    %v585 = vld [vmem:[%s581 + $0x18] sm:$0xff]
    %v586 = vld [vmem:[%s581 + $0x20] sm:$0xff]
    %v587 = vld [vmem:[%s581 + $0x28] sm:$0xff]
    %v588 = vld [vmem:[%s581 + $0x30] sm:$0xff]
    %v589 = vld [vmem:[%s581 + $0x38] sm:$0xff]
    %v591 = vsel %vm140, %v577, 0
    %v594 = vsel %vm140, %v578, 0
    %v597 = vsel %vm140, %v579, 0
    %v600 = vsel %vm140, %v580, 0
    %602 = vmatprep.subr.mxu0 0.0
    %603 = vmatpush1.msra.mxu0 %v582
    %604 = vmatprep.subr.mxu0 0.0
    %605 = vmatpush1.msra.mxu0 %v583
    %606 = vmatprep.subr.mxu0 0.0
    %607 = vmatpush1.msra.mxu0 %v584
    %608 = vmatprep.subr.mxu0 0.0
    %609 = vmatpush1.msra.mxu0 %v585
    %610 = vmatprep.subr.mxu0 0.0
    %611 = vmatpush1.msra.mxu0 %v586
    %612 = vmatprep.subr.mxu0 0.0
    %613 = vmatpush1.msra.mxu0 %v587
    %614 = vmatprep.subr.mxu0 0.0
    %615 = vmatpush1.msra.mxu0 %v588
    %616 = vmatprep.subr.mxu0 0.0
    %617 = vmatpush1.msra.mxu0 %v589
    %618 = vmatprep.subr.mxu0 0.0
    %619 = vmatpush1.msra.mxu0 0.0
    %620 = vmatprep.subr.mxu0 0.0
    %621 = vmatpush1.msra.mxu0 0.0
    %622 = vmatprep.subr.mxu0 0.0
    %623 = vmatpush1.msra.mxu0 0.0
    %624 = vmatprep.subr.mxu0 0.0
    %625 = vmatpush1.msra.mxu0 0.0
    %626 = vmatprep.subr.mxu0 0.0
    %627 = vmatpush1.msra.mxu0 0.0
    %628 = vmatprep.subr.mxu0 0.0
    %629 = vmatpush1.msra.mxu0 0.0
    %630 = vmatprep.subr.mxu0 0.0
    %631 = vmatpush1.msra.mxu0 0.0
    %632 = vmatprep.subr.mxu0 0.0
    %633 = vmatpush1.msra.mxu0 0.0
    %634 = vmatprep.subr.mxu0 0.0
    %635 = vmatpush1.msra.mxu0 0.0
    %636 = vmatprep.subr.mxu0 0.0
    %637 = vmatpush1.msra.mxu0 0.0
    %638 = vmatprep.subr.mxu0 0.0
    %639 = vmatpush1.msra.mxu0 0.0
    %640 = vmatprep.subr.mxu0 0.0
    %641 = vmatpush1.msra.mxu0 0.0
    %642 = vmatprep.subr.mxu0 0.0
    %643 = vmatpush1.msra.mxu0 0.0
    %644 = vmatprep.subr.mxu0 0.0
    %645 = vmatpush1.msra.mxu0 0.0
    %646 = vmatprep.subr.mxu0 0.0
    %647 = vmatpush1.msra.mxu0 0.0
    %648 = vmatprep.subr.mxu0 0.0
    %649 = vmatpush1.msra.mxu0 0.0
    %650 = vmatprep.subr.mxu0 0.0
    %651 = vmatpush1.msra.mxu0 0.0
    %652 = vmatprep.subr.mxu0 0.0
    %653 = vmatpush1.msra.mxu0 0.0
    %654 = vmatprep.subr.mxu0 0.0
    %655 = vmatpush1.msra.mxu0 0.0
    %656 = vmatprep.subr.mxu0 0.0
    %657 = vmatpush1.msra.mxu0 0.0
    %658 = vmatprep.subr.mxu0 0.0
    %659 = vmatpush1.msra.mxu0 0.0
    %660 = vmatprep.subr.mxu0 0.0
    %661 = vmatpush1.msra.mxu0 0.0
    %662 = vmatprep.subr.mxu0 0.0
    %663 = vmatpush1.msra.mxu0 0.0
    %664 = vmatprep.subr.mxu0 0.0
    %665 = vmatpush1.msra.mxu0 0.0
    %666 = vmatprep.mubr.f32.mxu0 0.0
    %667 = vmatmul.mubr.f32.gmra.mrb[0].mxu0 %v591
    %v668 = vpop.f32.mrb[0].mxu0
    %v669 = vadd.f32 0.0, %v668
    %v670 = vpop.f32.mrb[0].mxu0
    %671 = vmatprep.mubr.f32.mxu0 0.0
    %672 = vmatmul.mubr.f32.gmra.mrb[0].mxu0 %v594
    %v673 = vpop.f32.mrb[0].mxu0
    %v674 = vadd.f32 0.0, %v673
    %v675 = vpop.f32.mrb[0].mxu0
    %676 = vmatprep.mubr.f32.mxu0 0.0
    %677 = vmatmul.mubr.f32.gmra.mrb[0].mxu0 %v597
    %v678 = vpop.f32.mrb[0].mxu0
    %v679 = vadd.f32 0.0, %v678
    %v680 = vpop.f32.mrb[0].mxu0
    %681 = vmatprep.mubr.f32.mxu0 0.0
    %682 = vmatmul.mubr.f32.gmra.mrb[0].mxu0 %v600
    %v683 = vpop.f32.mrb[0].mxu0
    %v684 = vadd.f32 0.0, %v683
    %v685 = vpop.f32.mrb[0].mxu0
    %686 = vdwg.mxu0
    %v687 = vadd.f32 %v559, %v669
    %v688 = vadd.f32 %v564, %v674
    %v689 = vadd.f32 %v569, %v679
    %v690 = vadd.f32 %v574, %v684
    %v692 = vlaneseq
    %v693 = vshrl.u32 %v692, 7
    %v694 = vsub.s32 0, %v693
    %v695 = vrot.slane %v353, %v694
    %v697 = vadd.f32 %v687, %v695
    %v698 = vadd.f32 %v688, %v695
    %v699 = vadd.f32 %v689, %v695
    %v700 = vadd.f32 %v690, %v695
    %v701 = vld [vmem:[#allocation9] sm:$0xff]
    %v702 = vld [vmem:[#allocation9 + $0x8] sm:$0xff]
    %v703 = vld [vmem:[#allocation9 + $0x10] sm:$0xff]
    %v704 = vld [vmem:[#allocation9 + $0x18] sm:$0xff]
    %v705 = vld [vmem:[#allocation9 + $0x20] sm:$0xff]
    %v706 = vld [vmem:[#allocation9 + $0x28] sm:$0xff]
    %v707 = vld [vmem:[#allocation9 + $0x30] sm:$0xff]
    %v708 = vld [vmem:[#allocation9 + $0x38] sm:$0xff]
    %v709 = vld [vmem:[#allocation9 + $0x40] sm:$0xff]
    %v710 = vld [vmem:[#allocation9 + $0x48] sm:$0xff]
    %v711 = vld [vmem:[#allocation9 + $0x50] sm:$0xff]
    %v712 = vld [vmem:[#allocation9 + $0x58] sm:$0xff]
    %v713 = vld [vmem:[#allocation9 + $0x60] sm:$0xff]
    %v714 = vld [vmem:[#allocation9 + $0x68] sm:$0xff]
    %v715 = vld [vmem:[#allocation9 + $0x70] sm:$0xff]
    %v716 = vld [vmem:[#allocation9 + $0x78] sm:$0xff]
    %v717 = vadd.f32 %v697, %v698
    %v718 = vadd.f32 %v717, %v699
    %v719 = vadd.f32 %v718, %v700
    %v720 = vrot.slane %v719, 4
    %v721 = vadd.f32 %v719, %v720
    %v722 = vrot.slane %v721, 2
    %v723 = vadd.f32 %v721, %v722
    %v724 = vrot.slane %v723, 1
    %v725 = vadd.f32 %v723, %v724
    %726 = vmatprep.subr.mxu0 0.0
    %727 = vmatpush1.msra.mxu0 %v701
    %728 = vmatprep.subr.mxu0 0.0
    %729 = vmatpush1.msra.mxu0 %v702
    %730 = vmatprep.subr.mxu0 0.0
    %731 = vmatpush1.msra.mxu0 %v703
    %732 = vmatprep.subr.mxu0 0.0
    %733 = vmatpush1.msra.mxu0 %v704
    %734 = vmatprep.subr.mxu0 0.0
    %735 = vmatpush1.msra.mxu0 %v705
    %736 = vmatprep.subr.mxu0 0.0
    %737 = vmatpush1.msra.mxu0 %v706
    %738 = vmatprep.subr.mxu0 0.0
    %739 = vmatpush1.msra.mxu0 %v707
    %740 = vmatprep.subr.mxu0 0.0
    %741 = vmatpush1.msra.mxu0 %v708
    %742 = vmatprep.subr.mxu0 0.0
    %743 = vmatpush1.msra.mxu0 %v709
    %744 = vmatprep.subr.mxu0 0.0
    %745 = vmatpush1.msra.mxu0 %v710
    %746 = vmatprep.subr.mxu0 0.0
    %747 = vmatpush1.msra.mxu0 %v711
    %748 = vmatprep.subr.mxu0 0.0
    %749 = vmatpush1.msra.mxu0 %v712
    %750 = vmatprep.subr.mxu0 0.0
    %751 = vmatpush1.msra.mxu0 %v713
    %752 = vmatprep.subr.mxu0 0.0
    %753 = vmatpush1.msra.mxu0 %v714
    %754 = vmatprep.subr.mxu0 0.0
    %755 = vmatpush1.msra.mxu0 %v715
    %756 = vmatprep.subr.mxu0 0.0
    %757 = vmatpush1.msra.mxu0 %v716
    %758 = vmatprep.subr.mxu0 0.0
    %759 = vmatpush1.msra.mxu0 0.0
    %760 = vmatprep.subr.mxu0 0.0
    %761 = vmatpush1.msra.mxu0 0.0
    %762 = vmatprep.subr.mxu0 0.0
    %763 = vmatpush1.msra.mxu0 0.0
    %764 = vmatprep.subr.mxu0 0.0
    %765 = vmatpush1.msra.mxu0 0.0
    %766 = vmatprep.subr.mxu0 0.0
    %767 = vmatpush1.msra.mxu0 0.0
    %768 = vmatprep.subr.mxu0 0.0
    %769 = vmatpush1.msra.mxu0 0.0
    %770 = vmatprep.subr.mxu0 0.0
    %771 = vmatpush1.msra.mxu0 0.0
    %772 = vmatprep.subr.mxu0 0.0
    %773 = vmatpush1.msra.mxu0 0.0
    %774 = vmatprep.subr.mxu0 0.0
    %775 = vmatpush1.msra.mxu0 0.0
    %776 = vmatprep.subr.mxu0 0.0
    %777 = vmatpush1.msra.mxu0 0.0
    %778 = vmatprep.subr.mxu0 0.0
    %779 = vmatpush1.msra.mxu0 0.0
    %780 = vmatprep.subr.mxu0 0.0
    %781 = vmatpush1.msra.mxu0 0.0
    %782 = vmatprep.subr.mxu0 0.0
    %783 = vmatpush1.msra.mxu0 0.0
    %784 = vmatprep.subr.mxu0 0.0
    %785 = vmatpush1.msra.mxu0 0.0
    %786 = vmatprep.subr.mxu0 0.0
    %787 = vmatpush1.msra.mxu0 0.0
    %788 = vmatprep.subr.mxu0 0.0
    %789 = vmatpush1.msra.mxu0 0.0
    %790 = vmatprep.mubr.f32.mxu0 0.0
    %791 = vmatmul.mubr.f32.gmra.mrb[0].mxu0 %v725
    %v792 = vpop.f32.mrb[0].mxu0
    %v793 = vadd.f32 0.0, %v792
    %v794 = vpop.f32.mrb[0].mxu0
    %795 = vdwg.mxu0
    %v796 = vlaneseq
    %v797 = vshrl.u32 %v796, 7
    %v798 = vsub.s32 0, %v797
    %v799 = vrot.slane %v793, %v798
    %v800 = vsub.f32 %v697, %v799
    %v801 = vsub.f32 %v698, %v799
    %v802 = vsub.f32 %v699, %v799
    %v803 = vsub.f32 %v700, %v799
    %v804 = vmul.f32 %v800, %v800
    %v805 = vmul.f32 %v801, %v801
    %v806 = vmul.f32 %v802, %v802
    %v807 = vmul.f32 %v803, %v803
    %v808 = vadd.f32 %v804, %v805
    %v809 = vadd.f32 %v808, %v806
    %v810 = vadd.f32 %v809, %v807
    %v811 = vrot.slane %v810, 4
    %v812 = vadd.f32 %v810, %v811
    %v813 = vrot.slane %v812, 2
    %v814 = vadd.f32 %v812, %v813
    %v815 = vrot.slane %v814, 1
    %v816 = vadd.f32 %v814, %v815
    %v817 = vld [vmem:[%s7] sm:$0x1]
    %818 = vmatprep.subr.mxu0 0.0
    %819 = vmatpush1.msra.mxu0 %v701
    %820 = vmatprep.subr.mxu0 0.0
    %821 = vmatpush1.msra.mxu0 %v702
    %822 = vmatprep.subr.mxu0 0.0
    %823 = vmatpush1.msra.mxu0 %v703
    %824 = vmatprep.subr.mxu0 0.0
    %825 = vmatpush1.msra.mxu0 %v704
    %826 = vmatprep.subr.mxu0 0.0
    %827 = vmatpush1.msra.mxu0 %v705
    %828 = vmatprep.subr.mxu0 0.0
    %829 = vmatpush1.msra.mxu0 %v706
    %830 = vmatprep.subr.mxu0 0.0
    %831 = vmatpush1.msra.mxu0 %v707
    %832 = vmatprep.subr.mxu0 0.0
    %833 = vmatpush1.msra.mxu0 %v708
    %834 = vmatprep.subr.mxu0 0.0
    %835 = vmatpush1.msra.mxu0 %v709
    %836 = vmatprep.subr.mxu0 0.0
    %837 = vmatpush1.msra.mxu0 %v710
    %838 = vmatprep.subr.mxu0 0.0
    %839 = vmatpush1.msra.mxu0 %v711
    %840 = vmatprep.subr.mxu0 0.0
    %841 = vmatpush1.msra.mxu0 %v712
    %842 = vmatprep.subr.mxu0 0.0
    %843 = vmatpush1.msra.mxu0 %v713
    %844 = vmatprep.subr.mxu0 0.0
    %845 = vmatpush1.msra.mxu0 %v714
    %846 = vmatprep.subr.mxu0 0.0
    %847 = vmatpush1.msra.mxu0 %v715
    %848 = vmatprep.subr.mxu0 0.0
    %849 = vmatpush1.msra.mxu0 %v716
    %850 = vmatprep.subr.mxu0 0.0
    %851 = vmatpush1.msra.mxu0 0.0
    %852 = vmatprep.subr.mxu0 0.0
    %853 = vmatpush1.msra.mxu0 0.0
    %854 = vmatprep.subr.mxu0 0.0
    %855 = vmatpush1.msra.mxu0 0.0
    %856 = vmatprep.subr.mxu0 0.0
    %857 = vmatpush1.msra.mxu0 0.0
    %858 = vmatprep.subr.mxu0 0.0
    %859 = vmatpush1.msra.mxu0 0.0
    %860 = vmatprep.subr.mxu0 0.0
    %861 = vmatpush1.msra.mxu0 0.0
    %862 = vmatprep.subr.mxu0 0.0
    %863 = vmatpush1.msra.mxu0 0.0
    %864 = vmatprep.subr.mxu0 0.0
    %865 = vmatpush1.msra.mxu0 0.0
    %866 = vmatprep.subr.mxu0 0.0
    %867 = vmatpush1.msra.mxu0 0.0
    %868 = vmatprep.subr.mxu0 0.0
    %869 = vmatpush1.msra.mxu0 0.0
    %870 = vmatprep.subr.mxu0 0.0
    %871 = vmatpush1.msra.mxu0 0.0
    %872 = vmatprep.subr.mxu0 0.0
    %873 = vmatpush1.msra.mxu0 0.0
    %874 = vmatprep.subr.mxu0 0.0
    %875 = vmatpush1.msra.mxu0 0.0
    %876 = vmatprep.subr.mxu0 0.0
    %877 = vmatpush1.msra.mxu0 0.0
    %878 = vmatprep.subr.mxu0 0.0
    %879 = vmatpush1.msra.mxu0 0.0
    %880 = vmatprep.subr.mxu0 0.0
    %881 = vmatpush1.msra.mxu0 0.0
    %882 = vmatprep.mubr.f32.mxu0 0.0
    %883 = vmatmul.mubr.f32.gmra.mrb[0].mxu0 %v816
    %v884 = vpop.f32.mrb[0].mxu0
    %v885 = vadd.f32 1e-05, %v884
    %v886 = vpop.f32.mrb[0].mxu0
    %887 = vdwg.mxu0
    %v888 = vrsqrt.pop %v885
    %v889 = vmul.f32 %v817, %v888
    %v891 = vlaneseq
    %v892 = vshrl.u32 %v891, 7
    %v893 = vsub.s32 0, %v892
    %v894 = vrot.slane %v889, %v893
    %v896 = vmul.f32 %v800, %v894
    %v897 = vmul.f32 %v801, %v894
    %v898 = vmul.f32 %v802, %v894
    %v899 = vmul.f32 %v803, %v894
    %v900 = vld [vmem:[%s8] sm:$0x1]
    %v902 = vlaneseq
    %v903 = vshrl.u32 %v902, 7
    %v904 = vsub.s32 0, %v903
    %v905 = vrot.slane %v900, %v904
    %v907 = vadd.f32 %v896, %v905
    %v908 = vadd.f32 %v897, %v905
    %v909 = vadd.f32 %v898, %v905
    %v910 = vadd.f32 %v899, %v905
    %v911 = vmax.f32 %v907, 0.0
    %v912 = vmax.f32 %v908, 0.0
    %v913 = vmax.f32 %v909, 0.0
    %v914 = vmax.f32 %v910, 0.0
    %915 = vst [vmem:[#allocation2 + $0x1] sm:$0xff] %v911
    %916 = vst [vmem:[#allocation2 + $0x9] sm:$0xff] %v912
    %917 = vst [vmem:[#allocation2 + $0x19] sm:$0xff] %v913
    %918 = vst [vmem:[#allocation2 + $0x21] sm:$0xff] %v914
    %v919 = vld [vmem:[#allocation2] sm:$0xff]
    %v920 = vld [vmem:[#allocation2 + $0x8] sm:$0xff]
    %v921 = vld [vmem:[#allocation2 + $0x18] sm:$0xff]
    %v922 = vld [vmem:[#allocation2 + $0x20] sm:$0xff]
    %v923 = vld [vmem:[#allocation11] sm:$0xff]
    %v924 = vld [vmem:[#allocation11 + $0x8] sm:$0xff]
    %v925 = vld [vmem:[#allocation11 + $0x10] sm:$0xff]
    %v926 = vld [vmem:[#allocation11 + $0x18] sm:$0xff]
    %v927 = vld [vmem:[#allocation11 + $0x20] sm:$0xff]
    %v928 = vld [vmem:[#allocation11 + $0x28] sm:$0xff]
    %v929 = vld [vmem:[#allocation11 + $0x30] sm:$0xff]
    %v930 = vld [vmem:[#allocation11 + $0x38] sm:$0xff]
    %v931 = vld [vmem:[#allocation11 + $0x40] sm:$0xff]
    %v932 = vld [vmem:[#allocation11 + $0x48] sm:$0xff]
    %v933 = vld [vmem:[#allocation11 + $0x50] sm:$0xff]
    %v934 = vld [vmem:[#allocation11 + $0x58] sm:$0xff]
    %v935 = vld [vmem:[#allocation11 + $0x60] sm:$0xff]
    %v936 = vld [vmem:[#allocation11 + $0x68] sm:$0xff]
    %v937 = vld [vmem:[#allocation11 + $0x70] sm:$0xff]
    %v938 = vld [vmem:[#allocation11 + $0x78] sm:$0xff]
    %v939 = vld [vmem:[#allocation2 + $0x1] sm:$0xff]
    %v940 = vld [vmem:[#allocation2 + $0x9] sm:$0xff]
    %v941 = vld [vmem:[#allocation2 + $0x19] sm:$0xff]
    %v942 = vld [vmem:[#allocation2 + $0x21] sm:$0xff]
    %s943 = scalar_lea.vmem [#allocation11], 128
    %v944 = vld [vmem:[%s943] sm:$0xff]
    %v945 = vld [vmem:[%s943 + $0x8] sm:$0xff]
    %v946 = vld [vmem:[%s943 + $0x10] sm:$0xff]
    %v947 = vld [vmem:[%s943 + $0x18] sm:$0xff]
    %v948 = vld [vmem:[%s943 + $0x20] sm:$0xff]
    %v949 = vld [vmem:[%s943 + $0x28] sm:$0xff]
    %v950 = vld [vmem:[%s943 + $0x30] sm:$0xff]
    %v951 = vld [vmem:[%s943 + $0x38] sm:$0xff]
    %v952 = vld [vmem:[%s943 + $0x40] sm:$0xff]
    %v953 = vld [vmem:[%s943 + $0x48] sm:$0xff]
    %v954 = vld [vmem:[%s943 + $0x50] sm:$0xff]
    %v955 = vld [vmem:[%s943 + $0x58] sm:$0xff]
    %v956 = vld [vmem:[%s943 + $0x60] sm:$0xff]
    %v957 = vld [vmem:[%s943 + $0x68] sm:$0xff]
    %v958 = vld [vmem:[%s943 + $0x70] sm:$0xff]
    %v959 = vld [vmem:[%s943 + $0x78] sm:$0xff]
    %960 = vmatprep.subr.mxu0 0.0
    %961 = vmatpush1.msra.mxu0 %v944
    %962 = vmatprep.subr.mxu0 0.0
    %963 = vmatpush1.msra.mxu0 %v945
    %964 = vmatprep.subr.mxu0 0.0
    %965 = vmatpush1.msra.mxu0 %v946
    %966 = vmatprep.subr.mxu0 0.0
    %967 = vmatpush1.msra.mxu0 %v947
    %968 = vmatprep.subr.mxu0 0.0
    %969 = vmatpush1.msra.mxu0 %v948
    %970 = vmatprep.subr.mxu0 0.0
    %971 = vmatpush1.msra.mxu0 %v949
    %972 = vmatprep.subr.mxu0 0.0
    %973 = vmatpush1.msra.mxu0 %v950
    %974 = vmatprep.subr.mxu0 0.0
    %975 = vmatpush1.msra.mxu0 %v951
    %976 = vmatprep.subr.mxu0 0.0
    %977 = vmatpush1.msra.mxu0 %v952
    %978 = vmatprep.subr.mxu0 0.0
    %979 = vmatpush1.msra.mxu0 %v953
    %980 = vmatprep.subr.mxu0 0.0
    %981 = vmatpush1.msra.mxu0 %v954
    %982 = vmatprep.subr.mxu0 0.0
    %983 = vmatpush1.msra.mxu0 %v955
    %984 = vmatprep.subr.mxu0 0.0
    %985 = vmatpush1.msra.mxu0 %v956
    %986 = vmatprep.subr.mxu0 0.0
    %987 = vmatpush1.msra.mxu0 %v957
    %988 = vmatprep.subr.mxu0 0.0
    %989 = vmatpush1.msra.mxu0 %v958
    %990 = vmatprep.subr.mxu0 0.0
    %991 = vmatpush1.msra.mxu0 %v959
    %992 = vmatprep.subr.mxu0 0.0
    %993 = vmatpush1.msra.mxu0 0.0
    %994 = vmatprep.subr.mxu0 0.0
    %995 = vmatpush1.msra.mxu0 0.0
    %996 = vmatprep.subr.mxu0 0.0
    %997 = vmatpush1.msra.mxu0 0.0
    %998 = vmatprep.subr.mxu0 0.0
    %999 = vmatpush1.msra.mxu0 0.0
    %1000 = vmatprep.subr.mxu0 0.0
    %1001 = vmatpush1.msra.mxu0 0.0
    %1002 = vmatprep.subr.mxu0 0.0
    %1003 = vmatpush1.msra.mxu0 0.0
    %1004 = vmatprep.subr.mxu0 0.0
    %1005 = vmatpush1.msra.mxu0 0.0
    %1006 = vmatprep.subr.mxu0 0.0
    %1007 = vmatpush1.msra.mxu0 0.0
    %1008 = vmatprep.subr.mxu0 0.0
    %1009 = vmatpush1.msra.mxu0 0.0
    %1010 = vmatprep.subr.mxu0 0.0
    %1011 = vmatpush1.msra.mxu0 0.0
    %1012 = vmatprep.subr.mxu0 0.0
    %1013 = vmatpush1.msra.mxu0 0.0
    %1014 = vmatprep.subr.mxu0 0.0
    %1015 = vmatpush1.msra.mxu0 0.0
    %1016 = vmatprep.subr.mxu0 0.0
    %1017 = vmatpush1.msra.mxu0 0.0
    %1018 = vmatprep.subr.mxu0 0.0
    %1019 = vmatpush1.msra.mxu0 0.0
    %1020 = vmatprep.subr.mxu0 0.0
    %1021 = vmatpush1.msra.mxu0 0.0
    %1022 = vmatprep.subr.mxu0 0.0
    %1023 = vmatpush1.msra.mxu0 0.0
    %1024 = vmatprep.mubr.f32.mxu0 0.0
    %1025 = vmatmul.mubr.f32.gmra.mrb[0].mxu0 %v939
    %v1026 = vpop.f32.mrb[0].mxu0
    %v1027 = vadd.f32 0.0, %v1026
    %v1028 = vpop.f32.mrb[0].mxu0
    %1029 = vmatprep.mubr.f32.mxu0 0.0
    %1030 = vmatmul.mubr.f32.gmra.mrb[0].mxu0 %v940
    %v1031 = vpop.f32.mrb[0].mxu0
    %v1032 = vadd.f32 0.0, %v1031
    %v1033 = vpop.f32.mrb[0].mxu0
    %1034 = vmatprep.mubr.f32.mxu0 0.0
    %1035 = vmatmul.mubr.f32.gmra.mrb[0].mxu0 %v941
    %v1036 = vpop.f32.mrb[0].mxu0
    %v1037 = vadd.f32 0.0, %v1036
    %v1038 = vpop.f32.mrb[0].mxu0
    %1039 = vmatprep.mubr.f32.mxu0 0.0
    %1040 = vmatmul.mubr.f32.gmra.mrb[0].mxu0 %v942
    %v1041 = vpop.f32.mrb[0].mxu0
    %v1042 = vadd.f32 0.0, %v1041
    %v1043 = vpop.f32.mrb[0].mxu0
    %1044 = vdwg.mxu0
    %1045 = vmatprep.subr.mxu0 0.0
    %1046 = vmatpush1.msra.mxu0 %v923
    %1047 = vmatprep.subr.mxu0 0.0
    %1048 = vmatpush1.msra.mxu0 %v924
    %1049 = vmatprep.subr.mxu0 0.0
    %1050 = vmatpush1.msra.mxu0 %v925
    %1051 = vmatprep.subr.mxu0 0.0
    %1052 = vmatpush1.msra.mxu0 %v926
    %1053 = vmatprep.subr.mxu0 0.0
    %1054 = vmatpush1.msra.mxu0 %v927
    %1055 = vmatprep.subr.mxu0 0.0
    %1056 = vmatpush1.msra.mxu0 %v928
    %1057 = vmatprep.subr.mxu0 0.0
    %1058 = vmatpush1.msra.mxu0 %v929
    %1059 = vmatprep.subr.mxu0 0.0
    %1060 = vmatpush1.msra.mxu0 %v930
    %1061 = vmatprep.subr.mxu0 0.0
    %1062 = vmatpush1.msra.mxu0 %v931
    %1063 = vmatprep.subr.mxu0 0.0
    %1064 = vmatpush1.msra.mxu0 %v932
    %1065 = vmatprep.subr.mxu0 0.0
    %1066 = vmatpush1.msra.mxu0 %v933
    %1067 = vmatprep.subr.mxu0 0.0
    %1068 = vmatpush1.msra.mxu0 %v934
    %1069 = vmatprep.subr.mxu0 0.0
    %1070 = vmatpush1.msra.mxu0 %v935
    %1071 = vmatprep.subr.mxu0 0.0
    %1072 = vmatpush1.msra.mxu0 %v936
    %1073 = vmatprep.subr.mxu0 0.0
    %1074 = vmatpush1.msra.mxu0 %v937
    %1075 = vmatprep.subr.mxu0 0.0
    %1076 = vmatpush1.msra.mxu0 %v938
    %1077 = vmatprep.subr.mxu0 0.0
    %1078 = vmatpush1.msra.mxu0 0.0
    %1079 = vmatprep.subr.mxu0 0.0
    %1080 = vmatpush1.msra.mxu0 0.0
    %1081 = vmatprep.subr.mxu0 0.0
    %1082 = vmatpush1.msra.mxu0 0.0
    %1083 = vmatprep.subr.mxu0 0.0
    %1084 = vmatpush1.msra.mxu0 0.0
    %1085 = vmatprep.subr.mxu0 0.0
    %1086 = vmatpush1.msra.mxu0 0.0
    %1087 = vmatprep.subr.mxu0 0.0
    %1088 = vmatpush1.msra.mxu0 0.0
    %1089 = vmatprep.subr.mxu0 0.0
    %1090 = vmatpush1.msra.mxu0 0.0
    %1091 = vmatprep.subr.mxu0 0.0
    %1092 = vmatpush1.msra.mxu0 0.0
    %1093 = vmatprep.subr.mxu0 0.0
    %1094 = vmatpush1.msra.mxu0 0.0
    %1095 = vmatprep.subr.mxu0 0.0
    %1096 = vmatpush1.msra.mxu0 0.0
    %1097 = vmatprep.subr.mxu0 0.0
    %1098 = vmatpush1.msra.mxu0 0.0
    %1099 = vmatprep.subr.mxu0 0.0
    %1100 = vmatpush1.msra.mxu0 0.0
    %1101 = vmatprep.subr.mxu0 0.0
    %1102 = vmatpush1.msra.mxu0 0.0
    %1103 = vmatprep.subr.mxu0 0.0
    %1104 = vmatpush1.msra.mxu0 0.0
    %1105 = vmatprep.subr.mxu0 0.0
    %1106 = vmatpush1.msra.mxu0 0.0
    %1107 = vmatprep.subr.mxu0 0.0
    %1108 = vmatpush1.msra.mxu0 0.0
    %1109 = vmatprep.mubr.f32.mxu0 0.0
    %1110 = vmatmul.mubr.f32.gmra.mrb[0].mxu0 %v919
    %v1111 = vpop.f32.mrb[0].mxu0
    %v1112 = vadd.f32 %v1027, %v1111
    %v1113 = vpop.f32.mrb[0].mxu0
    %1114 = vmatprep.mubr.f32.mxu0 0.0
    %1115 = vmatmul.mubr.f32.gmra.mrb[0].mxu0 %v920
    %v1116 = vpop.f32.mrb[0].mxu0
    %v1117 = vadd.f32 %v1032, %v1116
    %v1118 = vpop.f32.mrb[0].mxu0
    %1119 = vmatprep.mubr.f32.mxu0 0.0
    %1120 = vmatmul.mubr.f32.gmra.mrb[0].mxu0 %v921
    %v1121 = vpop.f32.mrb[0].mxu0
    %v1122 = vadd.f32 %v1037, %v1121
    %v1123 = vpop.f32.mrb[0].mxu0
    %1124 = vmatprep.mubr.f32.mxu0 0.0
    %1125 = vmatmul.mubr.f32.gmra.mrb[0].mxu0 %v922
    %v1126 = vpop.f32.mrb[0].mxu0
    %v1127 = vadd.f32 %v1042, %v1126
    %v1128 = vpop.f32.mrb[0].mxu0
    %1129 = vdwg.mxu0
    %v1130 = vld [vmem:[#allocation2 + $0x2] sm:$0xff]
    %v1131 = vld [vmem:[#allocation2 + $0xa] sm:$0xff]
    %v1132 = vld [vmem:[#allocation2 + $0x1a] sm:$0xff]
    %v1133 = vld [vmem:[#allocation2 + $0x22] sm:$0xff]
    %s1134 = scalar_lea.vmem [#allocation11], 256
    %v1135 = vld [vmem:[%s1134] sm:$0xff]
    %v1136 = vld [vmem:[%s1134 + $0x8] sm:$0xff]
    %v1137 = vld [vmem:[%s1134 + $0x10] sm:$0xff]
    %v1138 = vld [vmem:[%s1134 + $0x18] sm:$0xff]
    %v1139 = vld [vmem:[%s1134 + $0x20] sm:$0xff]
    %v1140 = vld [vmem:[%s1134 + $0x28] sm:$0xff]
    %v1141 = vld [vmem:[%s1134 + $0x30] sm:$0xff]
    %v1142 = vld [vmem:[%s1134 + $0x38] sm:$0xff]
    %v1143 = vld [vmem:[%s1134 + $0x40] sm:$0xff]
    %v1144 = vld [vmem:[%s1134 + $0x48] sm:$0xff]
    %v1145 = vld [vmem:[%s1134 + $0x50] sm:$0xff]
    %v1146 = vld [vmem:[%s1134 + $0x58] sm:$0xff]
    %v1147 = vld [vmem:[%s1134 + $0x60] sm:$0xff]
    %v1148 = vld [vmem:[%s1134 + $0x68] sm:$0xff]
    %v1149 = vld [vmem:[%s1134 + $0x70] sm:$0xff]
    %v1150 = vld [vmem:[%s1134 + $0x78] sm:$0xff]
    %1151 = vmatprep.subr.mxu0 0.0
    %1152 = vmatpush1.msra.mxu0 %v1135
    %1153 = vmatprep.subr.mxu0 0.0
    %1154 = vmatpush1.msra.mxu0 %v1136
    %1155 = vmatprep.subr.mxu0 0.0
    %1156 = vmatpush1.msra.mxu0 %v1137
    %1157 = vmatprep.subr.mxu0 0.0
    %1158 = vmatpush1.msra.mxu0 %v1138
    %1159 = vmatprep.subr.mxu0 0.0
    %1160 = vmatpush1.msra.mxu0 %v1139
    %1161 = vmatprep.subr.mxu0 0.0
    %1162 = vmatpush1.msra.mxu0 %v1140
    %1163 = vmatprep.subr.mxu0 0.0
    %1164 = vmatpush1.msra.mxu0 %v1141
    %1165 = vmatprep.subr.mxu0 0.0
    %1166 = vmatpush1.msra.mxu0 %v1142
    %1167 = vmatprep.subr.mxu0 0.0
    %1168 = vmatpush1.msra.mxu0 %v1143
    %1169 = vmatprep.subr.mxu0 0.0
    %1170 = vmatpush1.msra.mxu0 %v1144
    %1171 = vmatprep.subr.mxu0 0.0
    %1172 = vmatpush1.msra.mxu0 %v1145
    %1173 = vmatprep.subr.mxu0 0.0
    %1174 = vmatpush1.msra.mxu0 %v1146
    %1175 = vmatprep.subr.mxu0 0.0
    %1176 = vmatpush1.msra.mxu0 %v1147
    %1177 = vmatprep.subr.mxu0 0.0
    %1178 = vmatpush1.msra.mxu0 %v1148
    %1179 = vmatprep.subr.mxu0 0.0
    %1180 = vmatpush1.msra.mxu0 %v1149
    %1181 = vmatprep.subr.mxu0 0.0
    %1182 = vmatpush1.msra.mxu0 %v1150
    %1183 = vmatprep.subr.mxu0 0.0
    %1184 = vmatpush1.msra.mxu0 0.0
    %1185 = vmatprep.subr.mxu0 0.0
    %1186 = vmatpush1.msra.mxu0 0.0
    %1187 = vmatprep.subr.mxu0 0.0
    %1188 = vmatpush1.msra.mxu0 0.0
    %1189 = vmatprep.subr.mxu0 0.0
    %1190 = vmatpush1.msra.mxu0 0.0
    %1191 = vmatprep.subr.mxu0 0.0
    %1192 = vmatpush1.msra.mxu0 0.0
    %1193 = vmatprep.subr.mxu0 0.0
    %1194 = vmatpush1.msra.mxu0 0.0
    %1195 = vmatprep.subr.mxu0 0.0
    %1196 = vmatpush1.msra.mxu0 0.0
    %1197 = vmatprep.subr.mxu0 0.0
    %1198 = vmatpush1.msra.mxu0 0.0
    %1199 = vmatprep.subr.mxu0 0.0
    %1200 = vmatpush1.msra.mxu0 0.0
    %1201 = vmatprep.subr.mxu0 0.0
    %1202 = vmatpush1.msra.mxu0 0.0
    %1203 = vmatprep.subr.mxu0 0.0
    %1204 = vmatpush1.msra.mxu0 0.0
    %1205 = vmatprep.subr.mxu0 0.0
    %1206 = vmatpush1.msra.mxu0 0.0
    %1207 = vmatprep.subr.mxu0 0.0
    %1208 = vmatpush1.msra.mxu0 0.0
    %1209 = vmatprep.subr.mxu0 0.0
    %1210 = vmatpush1.msra.mxu0 0.0
    %1211 = vmatprep.subr.mxu0 0.0
    %1212 = vmatpush1.msra.mxu0 0.0
    %1213 = vmatprep.subr.mxu0 0.0
    %1214 = vmatpush1.msra.mxu0 0.0
    %1215 = vmatprep.mubr.f32.mxu0 0.0
    %1216 = vmatmul.mubr.f32.gmra.mrb[0].mxu0 %v1130
    %v1217 = vpop.f32.mrb[0].mxu0
    %v1218 = vadd.f32 0.0, %v1217
    %v1219 = vpop.f32.mrb[0].mxu0
    %1220 = vmatprep.mubr.f32.mxu0 0.0
    %1221 = vmatmul.mubr.f32.gmra.mrb[0].mxu0 %v1131
    %v1222 = vpop.f32.mrb[0].mxu0
    %v1223 = vadd.f32 0.0, %v1222
    %v1224 = vpop.f32.mrb[0].mxu0
    %1225 = vmatprep.mubr.f32.mxu0 0.0
    %1226 = vmatmul.mubr.f32.gmra.mrb[0].mxu0 %v1132
    %v1227 = vpop.f32.mrb[0].mxu0
    %v1228 = vadd.f32 0.0, %v1227
    %v1229 = vpop.f32.mrb[0].mxu0
    %1230 = vmatprep.mubr.f32.mxu0 0.0
    %1231 = vmatmul.mubr.f32.gmra.mrb[0].mxu0 %v1133
    %v1232 = vpop.f32.mrb[0].mxu0
    %v1233 = vadd.f32 0.0, %v1232
    %v1234 = vpop.f32.mrb[0].mxu0
    %1235 = vdwg.mxu0
    %v1236 = vadd.f32 %v1112, %v1218
    %v1237 = vadd.f32 %v1117, %v1223
    %v1238 = vadd.f32 %v1122, %v1228
    %v1239 = vadd.f32 %v1127, %v1233
    %v1240 = vld [vmem:[#allocation12] sm:$0xff]
    %v1241 = vld [vmem:[#allocation12 + $0x8] sm:$0xff]
    %v1242 = vld [vmem:[#allocation12 + $0x10] sm:$0xff]
    %v1243 = vld [vmem:[#allocation12 + $0x18] sm:$0xff]
    %v1244 = vld [vmem:[#allocation12 + $0x20] sm:$0xff]
    %v1245 = vld [vmem:[#allocation12 + $0x28] sm:$0xff]
    %v1246 = vld [vmem:[#allocation12 + $0x30] sm:$0xff]
    %v1247 = vld [vmem:[#allocation12 + $0x38] sm:$0xff]
    %v1249 = vsel %vm140, %v128, 0
    %v1252 = vsel %vm140, %v129, 0
    %v1255 = vsel %vm140, %v130, 0
    %v1258 = vsel %vm140, %v131, 0
    %1260 = vmatprep.subr.mxu0 0.0
    %1261 = vmatpush1.msra.mxu0 %v1240
    %1262 = vmatprep.subr.mxu0 0.0
    %1263 = vmatpush1.msra.mxu0 %v1241
    %1264 = vmatprep.subr.mxu0 0.0
    %1265 = vmatpush1.msra.mxu0 %v1242
    %1266 = vmatprep.subr.mxu0 0.0
    %1267 = vmatpush1.msra.mxu0 %v1243
    %1268 = vmatprep.subr.mxu0 0.0
    %1269 = vmatpush1.msra.mxu0 %v1244
    %1270 = vmatprep.subr.mxu0 0.0
    %1271 = vmatpush1.msra.mxu0 %v1245
    %1272 = vmatprep.subr.mxu0 0.0
    %1273 = vmatpush1.msra.mxu0 %v1246
    %1274 = vmatprep.subr.mxu0 0.0
    %1275 = vmatpush1.msra.mxu0 %v1247
    %1276 = vmatprep.subr.mxu0 0.0
    %1277 = vmatpush1.msra.mxu0 0.0
    %1278 = vmatprep.subr.mxu0 0.0
    %1279 = vmatpush1.msra.mxu0 0.0
    %1280 = vmatprep.subr.mxu0 0.0
    %1281 = vmatpush1.msra.mxu0 0.0
    %1282 = vmatprep.subr.mxu0 0.0
    %1283 = vmatpush1.msra.mxu0 0.0
    %1284 = vmatprep.subr.mxu0 0.0
    %1285 = vmatpush1.msra.mxu0 0.0
    %1286 = vmatprep.subr.mxu0 0.0
    %1287 = vmatpush1.msra.mxu0 0.0
    %1288 = vmatprep.subr.mxu0 0.0
    %1289 = vmatpush1.msra.mxu0 0.0
    %1290 = vmatprep.subr.mxu0 0.0
    %1291 = vmatpush1.msra.mxu0 0.0
    %1292 = vmatprep.subr.mxu0 0.0
    %1293 = vmatpush1.msra.mxu0 0.0
    %1294 = vmatprep.subr.mxu0 0.0
    %1295 = vmatpush1.msra.mxu0 0.0
    %1296 = vmatprep.subr.mxu0 0.0
    %1297 = vmatpush1.msra.mxu0 0.0
    %1298 = vmatprep.subr.mxu0 0.0
    %1299 = vmatpush1.msra.mxu0 0.0
    %1300 = vmatprep.subr.mxu0 0.0
    %1301 = vmatpush1.msra.mxu0 0.0
    %1302 = vmatprep.subr.mxu0 0.0
    %1303 = vmatpush1.msra.mxu0 0.0
    %1304 = vmatprep.subr.mxu0 0.0
    %1305 = vmatpush1.msra.mxu0 0.0
    %1306 = vmatprep.subr.mxu0 0.0
    %1307 = vmatpush1.msra.mxu0 0.0
    %1308 = vmatprep.subr.mxu0 0.0
    %1309 = vmatpush1.msra.mxu0 0.0
    %1310 = vmatprep.subr.mxu0 0.0
    %1311 = vmatpush1.msra.mxu0 0.0
    %1312 = vmatprep.subr.mxu0 0.0
    %1313 = vmatpush1.msra.mxu0 0.0
    %1314 = vmatprep.subr.mxu0 0.0
    %1315 = vmatpush1.msra.mxu0 0.0
    %1316 = vmatprep.subr.mxu0 0.0
    %1317 = vmatpush1.msra.mxu0 0.0
    %1318 = vmatprep.subr.mxu0 0.0
    %1319 = vmatpush1.msra.mxu0 0.0
    %1320 = vmatprep.subr.mxu0 0.0
    %1321 = vmatpush1.msra.mxu0 0.0
    %1322 = vmatprep.subr.mxu0 0.0
    %1323 = vmatpush1.msra.mxu0 0.0
    %1324 = vmatprep.mubr.f32.mxu0 0.0
    %1325 = vmatmul.mubr.f32.gmra.mrb[0].mxu0 %v1249
    %v1326 = vpop.f32.mrb[0].mxu0
    %v1327 = vadd.f32 %v1236, %v1326
    %v1328 = vpop.f32.mrb[0].mxu0
    %1329 = vmatprep.mubr.f32.mxu0 0.0
    %1330 = vmatmul.mubr.f32.gmra.mrb[0].mxu0 %v1252
    %v1331 = vpop.f32.mrb[0].mxu0
    %v1332 = vadd.f32 %v1237, %v1331
    %v1333 = vpop.f32.mrb[0].mxu0
    %1334 = vmatprep.mubr.f32.mxu0 0.0
    %1335 = vmatmul.mubr.f32.gmra.mrb[0].mxu0 %v1255
    %v1336 = vpop.f32.mrb[0].mxu0
    %v1337 = vadd.f32 %v1238, %v1336
    %v1338 = vpop.f32.mrb[0].mxu0
    %1339 = vmatprep.mubr.f32.mxu0 0.0
    %1340 = vmatmul.mubr.f32.gmra.mrb[0].mxu0 %v1258
    %v1341 = vpop.f32.mrb[0].mxu0
    %v1342 = vadd.f32 %v1239, %v1341
    %v1343 = vpop.f32.mrb[0].mxu0
    %1344 = vdwg.mxu0
    %v1345 = vld [vmem:[%s10] sm:$0x1]
    %v1347 = vlaneseq
    %v1348 = vshrl.u32 %v1347, 7
    %v1349 = vsub.s32 0, %v1348
    %v1350 = vrot.slane %v1345, %v1349
    %v1352 = vadd.f32 %v1327, %v1350
    %v1353 = vadd.f32 %v1332, %v1350
    %v1354 = vadd.f32 %v1337, %v1350
    %v1355 = vadd.f32 %v1342, %v1350
    %1356 = vst [vmem:[#allocation14] sm:$0xff] %v1352
    %1357 = vst [vmem:[#allocation14 + $0x8] sm:$0xff] %v1353
    %1358 = vst [vmem:[#allocation14 + $0x10] sm:$0xff] %v1354
    %1359 = vst [vmem:[#allocation14 + $0x18] sm:$0xff] %v1355
    // Predicated region
    $region74: #{tpu_custom_call.1} parent=1 // pred_check
      _
    $region75: #{tpu_custom_call.1} parent=1 // pred_check_branch
      %1361 = sbr.rel (0) target = $region77
    $region76: #{tpu_custom_call.1} parent=1 // pred_region
      %s1363 = ssub.s32 512, 512
      %1364 = vsyncadd [#allocation5], %s1363
      %s1365 = sshll.u32 [#allocation14], 4
      %s1366 = int_to_ptr.vmem [resolvable:$true] %s1365
      %1371 = dma.vmem_to_hbm [thread:$0]  %s1366, 512, %s12, [#allocation5], 128, 128, 8
    $region77: #{tpu_custom_call.1} parent=1 // pred_fallthru
      _
    // Predicated region
    $region78: #{tpu_custom_call.1} parent=1 // pred_check
      _
    $region79: #{tpu_custom_call.1} parent=1 // pred_check_branch
      %1373 = sbr.rel (0) target = $region81
    $region80: #{tpu_custom_call.1} parent=1 // pred_region
      %1374 = dma.done [#allocation5], 512
    $region81: #{tpu_custom_call.1} parent=1 // pred_fallthru
      _
    %1375 = vsyncpa [#allocation4], 1
    %1376 = vsyncpa [#allocation7], 1
    %1377 = vsyncpa [#allocation10], 1
    %1378 = vsyncpa [#allocation13], 1
    %1379 = vsyncpa [#allocation5], 1

</llo_original>
